<compile_context>
chip_gen: v7x
topology: tpu7x:2x2x1
jax: 0.10.0
libtpu: 0.0.40
codegen_flags: <defaults>
</compile_context>

<pallas_src>
import functools
import math

import jax
import jax.numpy as jnp
from jax.experimental import pallas as pl
from jax.experimental.pallas import tpu as pltpu


def _silu(y):
    return y * jax.nn.sigmoid(y)


def _round_up(v, m):
    return ((v + m - 1) // m) * m


def _make_kernel(seq, c_pad, bt, scale, use_bf16):
    mm = jnp.bfloat16 if use_bf16 else jnp.float32

    def kernel(x_ref, f_ref, a_ref, w_ref, t_ref, wge_ref, wgi_ref, xo_ref, fo_ref):
        # x_ref  : (Bt, 3, N)   equivariant features, sequence on lanes
        # f_ref  : (Bt, N, Cp)  invariant features, padded channels on lanes
        # a_ref  : (3, 3, 3)    equivariant q/k/v projections, each pre-transposed (A^T)
        # w_ref  : (Cp, 3*Cp)   fused invariant q/k/v projection (cols = [q | k | v])
        # t_ref  : (N, N)       circular Toeplitz long-conv matrix
        # wge_ref: (3, Cp)      gamma gate invariant -> equivariant (pre-transposed)
        # wgi_ref: (3, Cp)      gamma gate equivariant -> invariant
        t_m = t_ref[...].astype(mm)
        a_q = a_ref[0]
        a_k = a_ref[1]
        a_v = a_ref[2]
        wge_t = wge_ref[...]
        wgi = wgi_ref[...]

        # ---- clifford_projection (invariant): one fused MXU matmul for the whole block ----
        f_blk = f_ref[...].reshape(bt * seq, c_pad)
        qkv_inv_blk = jnp.dot(f_blk.astype(mm), w_ref[...].astype(mm),
                              preferred_element_type=jnp.float32)          # (Bt*N, 3*Cp)

        def eqv_proj(a3, xb):
            # K=3 contraction as VPU broadcast FMAs:  (3,1)*(1,N) -> (3,N)
            return (a3[:, 0:1] * xb[0:1, :]
                    + a3[:, 1:2] * xb[1:2, :]
                    + a3[:, 2:3] * xb[2:3, :])

        for b in range(bt):                       # static unroll over the batch block
            x_b = x_ref[b]                        # (3, N)
            f_b = f_ref[b]                        # (N, Cp)
            r0 = b * seq
            q_inv = qkv_inv_blk[r0:r0 + seq, 0:c_pad]
            k_inv = qkv_inv_blk[r0:r0 + seq, c_pad:2 * c_pad]
            v_inv = qkv_inv_blk[r0:r0 + seq, 2 * c_pad:3 * c_pad]

            # ---- clifford_projection (equivariant) ----
            q_eqv = eqv_proj(a_q, x_b)            # (3, N)
            k_eqv = eqv_proj(a_k, x_b)            # (3, N)
            v_eqv = eqv_proj(a_v, x_b)            # (3, N)

            # ---- agg_eqv = VectorLongConv: circular Toeplitz conv, lane-dense output ----
            conv = jax.lax.dot_general(q_eqv.astype(mm), t_m,
                                       (((1,), (1,)), ((), ())),
                                       preferred_element_type=jnp.float32)  # (3, N)
            u_eqv = k_eqv * conv

            # ---- agg_inv = VectorSelfAttention with flash-style late normalization ----
            s = jax.lax.dot_general(q_inv.astype(mm), k_inv.astype(mm),
                                    (((1,), (1,)), ((), ())),
                                    preferred_element_type=jnp.float32) * scale  # (N, N)
            s_max = jnp.max(s, axis=-1, keepdims=True)
            p = jnp.exp(s - s_max)
            row_sum = jnp.sum(p, axis=-1, keepdims=True)                     # (N, 1)
            u_raw = jnp.dot(p.astype(mm), k_inv.astype(mm),
                            preferred_element_type=jnp.float32)              # (N, Cp)
            if use_bf16:
                inv_l = pl.reciprocal(row_sum, approx=True)                  # EUP slot
            else:
                inv_l = 1.0 / row_sum
            u_inv = u_raw * inv_l

            # ---- gamma_gate ----
            # m_eqv^T: (3, N) = Wge^T (3,Cp) . u_inv^T   (rhs-transposed MXU pattern)
            m_eqv = jax.lax.dot_general(wge_t, u_inv, (((1,), (1,)), ((), ())),
                                        preferred_element_type=jnp.float32)  # (3, N)
            # m_inv: (N, Cp) = u_eqv^T (N,3) . Wgi (3,Cp)  (tiny K=3 contraction)
            m_inv = jax.lax.dot_general(u_eqv, wgi, (((0,), (0,)), ((), ())),
                                        preferred_element_type=jnp.float32)  # (N, Cp)

            # ---- sigma_gate (sigmoid), VPU in f32 ----
            u_eqv_g = jax.nn.sigmoid(m_eqv) * u_eqv
            u_inv_g = jax.nn.sigmoid(m_inv) * u_inv

            # ---- VectorCrossProduct + zeta: one fused (3, N) store ----
            u0, u1, u2 = u_eqv_g[0:1, :], u_eqv_g[1:2, :], u_eqv_g[2:3, :]
            v0, v1, v2 = v_eqv[0:1, :], v_eqv[1:2, :], v_eqv[2:3, :]
            cross = jnp.concatenate([u1 * v2 - u2 * v1,
                                     u2 * v0 - u0 * v2,
                                     u0 * v1 - u1 * v0], axis=0)             # (3, N)
            xo_ref[b] = _silu(x_b + cross)

            # ---- VectorDotProduct + zeta: one fused (N, Cp) store ----
            d = jnp.sum(u_inv_g * v_inv, axis=-1, keepdims=True)             # (N, 1)
            fo_ref[b] = _silu(f_b + d)

    return kernel


@functools.partial(jax.jit, static_argnames=("use_bf16", "batch_block"))
def clifford_se3_hyena(x, f, A_proj, W_proj, T, W_ge, W_gi, *,
                       use_bf16=True, batch_block=None):
    B, N, _ = x.shape
    C = f.shape[-1]
    Cp = _round_up(C, 128)            # lane-dense invariant channel dim

    # Batches per grid step (amortizes the fixed ~0.35us per-step cost at small shapes).
    if batch_block is None:
        bt = 1
        for cand in range(min(B, 8), 0, -1):
            if B % cand == 0:
                bt = cand
                break
    else:
        bt = batch_block
    assert B % bt == 0, "batch_block must divide the batch size"

    # ---------------- wrapper-side layout plumbing (pure relayout, no math) --------------
    x_t = jnp.transpose(x, (0, 2, 1))                              # (B, 3, N)
    f_p = jnp.pad(f, ((0, 0), (0, 0), (0, Cp - C)))                # (B, N, Cp)

    a_all = jnp.transpose(A_proj, (0, 2, 1))                       # (3, 3, 3): A_q^T, A_k^T, A_v^T
    w_pad = jnp.pad(W_proj, ((0, 0), (0, Cp - C), (0, Cp - C)))    # (3, Cp, Cp)
    w_all = jnp.concatenate([w_pad[0], w_pad[1], w_pad[2]], axis=1)   # (Cp, 3*Cp)
    wge_t = jnp.pad(W_ge, ((0, Cp - C), (0, 0))).T                 # (3, Cp)
    wgi_p = jnp.pad(W_gi, ((0, 0), (0, Cp - C)))                   # (3, Cp)
    t_in = T
    if use_bf16:
        # Halve HBM traffic of the largest weights; accumulation stays f32 in-kernel.
        w_all = w_all.astype(jnp.bfloat16)
        t_in = T.astype(jnp.bfloat16)

    scale = 1.0 / math.sqrt(C)
    kernel = _make_kernel(N, Cp, bt, scale, use_bf16)

    # Advisory cost estimate for the XLA scheduler.
    flops = 2 * B * N * (Cp * 3 * Cp + 3 * N + 2 * N * Cp + 6 * Cp)
    transcendentals = B * N * (N + 2 * Cp + 8)
    bytes_accessed = 4 * (2 * B * 3 * N + 2 * B * N * Cp + N * N + 3 * Cp * Cp + 9 * Cp)

    grid_spec = pltpu.PrefetchScalarGridSpec(
        num_scalar_prefetch=0,
        grid=(B // bt,),
        in_specs=[
            pl.BlockSpec((bt, 3, N), lambda i: (i, 0, 0)),      # x  (B, 3, N)
            pl.BlockSpec((bt, N, Cp), lambda i: (i, 0, 0)),     # f  (B, N, Cp)
            pl.BlockSpec((3, 3, 3), lambda i: (0, 0, 0)),       # eqv q/k/v projections
            pl.BlockSpec((Cp, 3 * Cp), lambda i: (0, 0)),       # fused inv projection
            pl.BlockSpec((N, N), lambda i: (0, 0)),             # Toeplitz long-conv
            pl.BlockSpec((3, Cp), lambda i: (0, 0)),            # gamma gate (inv -> eqv)
            pl.BlockSpec((3, Cp), lambda i: (0, 0)),            # gamma gate (eqv -> inv)
        ],
        out_specs=[
            pl.BlockSpec((bt, 3, N), lambda i: (i, 0, 0)),
            pl.BlockSpec((bt, N, Cp), lambda i: (i, 0, 0)),
        ],
    )
    xo_t, fo_p = pl.pallas_call(
        kernel,
        out_shape=(jax.ShapeDtypeStruct((B, 3, N), jnp.float32),
                   jax.ShapeDtypeStruct((B, N, Cp), jnp.float32)),
        grid_spec=grid_spec,
        compiler_params=pltpu.CompilerParams(
            dimension_semantics=("parallel",)),
        cost_estimate=pl.CostEstimate(flops=flops,
                                      transcendentals=transcendentals,
                                      bytes_accessed=bytes_accessed),
    )(x_t, f_p, a_all, w_all, t_in, wge_t, wgi_p)

    x_out = jnp.transpose(xo_t, (0, 2, 1))     # back to the module's (B, N, 3)
    f_out = fo_p[..., :C]                      # drop channel padding
    return x_out, f_out


def reference(x, f, A_proj, W_proj, T, W_ge, W_gi):
    """Pure-JAX (f32) reference of the same forward semantics."""
    q_eqv = jnp.einsum('bnd,de->bne', x, A_proj[0])
    k_eqv = jnp.einsum('bnd,de->bne', x, A_proj[1])
    v_eqv = jnp.einsum('bnd,de->bne', x, A_proj[2])
    q_inv = jnp.einsum('bnc,cd->bnd', f, W_proj[0])
    k_inv = jnp.einsum('bnc,cd->bnd', f, W_proj[1])
    v_inv = jnp.einsum('bnc,cd->bnd', f, W_proj[2])

    u_eqv = k_eqv * jnp.einsum('nm,bmd->bnd', T, q_eqv)

    scale = 1.0 / jnp.sqrt(jnp.float32(q_inv.shape[-1]))
    s = jnp.einsum('bnc,bmc->bnm', q_inv, k_inv) * scale
    p = jax.nn.softmax(s, axis=-1)
    u_inv = jnp.einsum('bnm,bmc->bnc', p, k_inv)

    m_eqv = jnp.einsum('bnc,cd->bnd', u_inv, W_ge)
    m_inv = jnp.einsum('bnd,dc->bnc', u_eqv, W_gi)
    u_eqv = jax.nn.sigmoid(m_eqv) * u_eqv
    u_inv = jax.nn.sigmoid(m_inv) * u_inv

    x_new = _silu(x + jnp.cross(u_eqv, v_eqv))
    d = jnp.sum(u_inv * v_inv, axis=-1, keepdims=True)
    f_new = _silu(f + d)
    return x_new, f_new


if __name__ == "__main__":
    B, N, C = 2, 8, 32

    key = jax.random.PRNGKey(0)
    kx, kf, ka, kw, kh, kge, kgi = jax.random.split(key, 7)

    # Inputs.
    x = jax.random.normal(kx, (B, N, 3), dtype=jnp.float32)
    f = jax.random.normal(kf, (B, N, C), dtype=jnp.float32)

    # Deterministic synthetic parameters.
    A_proj = 0.5 * jax.random.normal(ka, (3, 3, 3), dtype=jnp.float32)
    W_proj = (1.0 / jnp.sqrt(C)) * jax.random.normal(kw, (3, C, C), dtype=jnp.float32)
    h = (1.0 / N) * jax.random.normal(kh, (N,), dtype=jnp.float32)   # long-conv filter
    # Circular Toeplitz matrix: T[n, m] = h[(n - m) mod N]   (glue, built outside kernel)
    idx = (jnp.arange(N)[:, None] - jnp.arange(N)[None, :]) % N
    T = h[idx].astype(jnp.float32)
    W_ge = (1.0 / jnp.sqrt(C)) * jax.random.normal(kge, (C, 3), dtype=jnp.float32)
    W_gi = 0.5 * jax.random.normal(kgi, (3, C), dtype=jnp.float32)

    x_gold, f_gold = reference(x, f, A_proj, W_proj, T, W_ge, W_gi)

    # Strict check: f32 MXU path must match the reference tightly.
    x_out, f_out = clifford_se3_hyena(x, f, A_proj, W_proj, T, W_ge, W_gi,
                                      use_bf16=False)
    jax.block_until_ready((x_out, f_out))
    assert x_out.shape[1] == f_out.shape[1], 'Dimension mismatch'
    assert x_out.shape[2] == 3, 'Spatial dimension must be three'
    assert jnp.allclose(x_out, x_gold, atol=2e-3, rtol=2e-3), "x mismatch (f32 path)"
    assert jnp.allclose(f_out, f_gold, atol=2e-3, rtol=2e-3), "f mismatch (f32 path)"

    # Fast path: bf16 MXU operands + approx reciprocal (v6e/v7x); looser tolerance
    # because the reference stays in f32.
    x_fast, f_fast = clifford_se3_hyena(x, f, A_proj, W_proj, T, W_ge, W_gi,
                                        use_bf16=True)
    jax.block_until_ready((x_fast, f_fast))
    assert x_fast.shape == x_gold.shape and f_fast.shape == f_gold.shape
    assert jnp.allclose(x_fast, x_gold, atol=1e-1, rtol=1e-1), "x mismatch (bf16 path)"
    assert jnp.allclose(f_fast, f_gold, atol=1e-1, rtol=1e-1), "f mismatch (bf16 path)"

    print("KERNEL_OK")
</pallas_src>

<mosaic_0001>
module attributes {stable_mosaic.version = 11 : i64} {
  func.func @kernel(%arg0: i32, %arg1: memref<2x3x8xf32, #tpu.memory_space<vmem>>, %arg2: memref<2x8x128xf32, #tpu.memory_space<vmem>>, %arg3: memref<3x3x3xf32, #tpu.memory_space<vmem>>, %arg4: memref<128x384xf32, #tpu.memory_space<vmem>>, %arg5: memref<8x8xf32, #tpu.memory_space<vmem>>, %arg6: memref<3x128xf32, #tpu.memory_space<vmem>>, %arg7: memref<3x128xf32, #tpu.memory_space<vmem>>, %arg8: memref<2x3x8xf32, #tpu.memory_space<vmem>>, %arg9: memref<2x8x128xf32, #tpu.memory_space<vmem>>) attributes {dimension_semantics = [#tpu.dimension_semantics<parallel>], iteration_bounds = array<i64: 1>, scalar_prefetch = 0 : i64, scratch_operands = 0 : i64, tpu.core_type = #tpu.core_type<tc>, window_params = [{transform_indices = @transform_0, window_bounds = array<i64: 2, 3, 8>}, {transform_indices = @transform_1, window_bounds = array<i64: 2, 8, 128>}, {pipeline_mode = #tpu.pipeline_mode<synchronous>, transform_indices = @transform_2, window_bounds = array<i64: 3, 3, 3>}, {pipeline_mode = #tpu.pipeline_mode<synchronous>, transform_indices = @transform_3, window_bounds = array<i64: 128, 384>}, {pipeline_mode = #tpu.pipeline_mode<synchronous>, transform_indices = @transform_4, window_bounds = array<i64: 8, 8>}, {pipeline_mode = #tpu.pipeline_mode<synchronous>, transform_indices = @transform_5, window_bounds = array<i64: 3, 128>}, {pipeline_mode = #tpu.pipeline_mode<synchronous>, transform_indices = @transform_6, window_bounds = array<i64: 3, 128>}, {transform_indices = @transform_7, window_bounds = array<i64: 2, 3, 8>}, {transform_indices = @transform_8, window_bounds = array<i64: 2, 8, 128>}]} {
    %c0 = arith.constant 0 : index
    %c0_0 = arith.constant 0 : index
    %0 = vector.load %arg5[%c0, %c0_0] : memref<8x8xf32, #tpu.memory_space<vmem>>, vector<8x8xf32>
    %c0_1 = arith.constant 0 : index
    %c0_2 = arith.constant 0 : index
    %c0_3 = arith.constant 0 : index
    %1 = vector.load %arg3[%c0_1, %c0_2, %c0_3] : memref<3x3x3xf32, #tpu.memory_space<vmem>>, vector<1x3x3xf32>
    %2 = vector.shape_cast %1 : vector<1x3x3xf32> to vector<3x3xf32>
    %c1 = arith.constant 1 : index
    %c0_4 = arith.constant 0 : index
    %c0_5 = arith.constant 0 : index
    %3 = vector.load %arg3[%c1, %c0_4, %c0_5] : memref<3x3x3xf32, #tpu.memory_space<vmem>>, vector<1x3x3xf32>
    %4 = vector.shape_cast %3 : vector<1x3x3xf32> to vector<3x3xf32>
    %c2 = arith.constant 2 : index
    %c0_6 = arith.constant 0 : index
    %c0_7 = arith.constant 0 : index
    %5 = vector.load %arg3[%c2, %c0_6, %c0_7] : memref<3x3x3xf32, #tpu.memory_space<vmem>>, vector<1x3x3xf32>
    %6 = vector.shape_cast %5 : vector<1x3x3xf32> to vector<3x3xf32>
    %c0_8 = arith.constant 0 : index
    %c0_9 = arith.constant 0 : index
    %7 = vector.load %arg6[%c0_8, %c0_9] : memref<3x128xf32, #tpu.memory_space<vmem>>, vector<3x128xf32>
    %c0_10 = arith.constant 0 : index
    %c0_11 = arith.constant 0 : index
    %8 = vector.load %arg7[%c0_10, %c0_11] : memref<3x128xf32, #tpu.memory_space<vmem>>, vector<3x128xf32>
    %c0_12 = arith.constant 0 : index
    %c0_13 = arith.constant 0 : index
    %c0_14 = arith.constant 0 : index
    %9 = vector.load %arg2[%c0_12, %c0_13, %c0_14] : memref<2x8x128xf32, #tpu.memory_space<vmem>>, vector<2x8x128xf32>
    %10 = vector.shape_cast %9 : vector<2x8x128xf32> to vector<16x128xf32>
    %c0_15 = arith.constant 0 : index
    %c0_16 = arith.constant 0 : index
    %11 = vector.load %arg4[%c0_15, %c0_16] : memref<128x384xf32, #tpu.memory_space<vmem>>, vector<128x384xf32>
    %cst = arith.constant dense<0.000000e+00> : vector<16x384xf32>
    %12 = tpu.matmul %10, %11, %cst {dimension_numbers = #tpu.dot_dimension_numbers<[1], [0], [0], [1], [0, 0, 1, 1], [], []>} : vector<16x128xf32>, vector<128x384xf32>, vector<16x384xf32> -> vector<16x384xf32>
    %c0_17 = arith.constant 0 : index
    %c0_18 = arith.constant 0 : index
    %c0_19 = arith.constant 0 : index
    %13 = vector.load %arg1[%c0_17, %c0_18, %c0_19] : memref<2x3x8xf32, #tpu.memory_space<vmem>>, vector<1x3x8xf32>
    %14 = vector.shape_cast %13 : vector<1x3x8xf32> to vector<3x8xf32>
    %c0_20 = arith.constant 0 : index
    %c0_21 = arith.constant 0 : index
    %c0_22 = arith.constant 0 : index
    %15 = vector.load %arg2[%c0_20, %c0_21, %c0_22] : memref<2x8x128xf32, #tpu.memory_space<vmem>>, vector<1x8x128xf32>
    %16 = vector.shape_cast %15 : vector<1x8x128xf32> to vector<8x128xf32>
    %17 = vector.extract_strided_slice %12 {offsets = [0, 0], sizes = [8, 128], strides = [1, 1]} : vector<16x384xf32> to vector<8x128xf32>
    %18 = vector.extract_strided_slice %12 {offsets = [0, 128], sizes = [8, 128], strides = [1, 1]} : vector<16x384xf32> to vector<8x128xf32>
    %19 = vector.extract_strided_slice %12 {offsets = [0, 256], sizes = [8, 128], strides = [1, 1]} : vector<16x384xf32> to vector<8x128xf32>
    %20 = vector.extract_strided_slice %2 {offsets = [0, 0], sizes = [3, 1], strides = [1, 1]} : vector<3x3xf32> to vector<3x1xf32>
    %21 = vector.extract_strided_slice %14 {offsets = [0, 0], sizes = [1, 8], strides = [1, 1]} : vector<3x8xf32> to vector<1x8xf32>
    %22 = vector.broadcast %20 : vector<3x1xf32> to vector<3x8xf32>
    %23 = vector.broadcast %21 : vector<1x8xf32> to vector<3x8xf32>
    %24 = arith.mulf %22, %23 : vector<3x8xf32>
    %25 = vector.extract_strided_slice %2 {offsets = [0, 1], sizes = [3, 1], strides = [1, 1]} : vector<3x3xf32> to vector<3x1xf32>
    %26 = vector.extract_strided_slice %14 {offsets = [1, 0], sizes = [1, 8], strides = [1, 1]} : vector<3x8xf32> to vector<1x8xf32>
    %27 = vector.broadcast %25 : vector<3x1xf32> to vector<3x8xf32>
    %28 = vector.broadcast %26 : vector<1x8xf32> to vector<3x8xf32>
    %29 = arith.mulf %27, %28 : vector<3x8xf32>
    %30 = arith.addf %24, %29 : vector<3x8xf32>
    %31 = vector.extract_strided_slice %2 {offsets = [0, 2], sizes = [3, 1], strides = [1, 1]} : vector<3x3xf32> to vector<3x1xf32>
    %32 = vector.extract_strided_slice %14 {offsets = [2, 0], sizes = [1, 8], strides = [1, 1]} : vector<3x8xf32> to vector<1x8xf32>
    %33 = vector.broadcast %31 : vector<3x1xf32> to vector<3x8xf32>
    %34 = vector.broadcast %32 : vector<1x8xf32> to vector<3x8xf32>
    %35 = arith.mulf %33, %34 : vector<3x8xf32>
    %36 = arith.addf %30, %35 : vector<3x8xf32>
    %37 = vector.extract_strided_slice %4 {offsets = [0, 0], sizes = [3, 1], strides = [1, 1]} : vector<3x3xf32> to vector<3x1xf32>
    %38 = vector.extract_strided_slice %14 {offsets = [0, 0], sizes = [1, 8], strides = [1, 1]} : vector<3x8xf32> to vector<1x8xf32>
    %39 = vector.broadcast %37 : vector<3x1xf32> to vector<3x8xf32>
    %40 = vector.broadcast %38 : vector<1x8xf32> to vector<3x8xf32>
    %41 = arith.mulf %39, %40 : vector<3x8xf32>
    %42 = vector.extract_strided_slice %4 {offsets = [0, 1], sizes = [3, 1], strides = [1, 1]} : vector<3x3xf32> to vector<3x1xf32>
    %43 = vector.extract_strided_slice %14 {offsets = [1, 0], sizes = [1, 8], strides = [1, 1]} : vector<3x8xf32> to vector<1x8xf32>
    %44 = vector.broadcast %42 : vector<3x1xf32> to vector<3x8xf32>
    %45 = vector.broadcast %43 : vector<1x8xf32> to vector<3x8xf32>
    %46 = arith.mulf %44, %45 : vector<3x8xf32>
    %47 = arith.addf %41, %46 : vector<3x8xf32>
    %48 = vector.extract_strided_slice %4 {offsets = [0, 2], sizes = [3, 1], strides = [1, 1]} : vector<3x3xf32> to vector<3x1xf32>
    %49 = vector.extract_strided_slice %14 {offsets = [2, 0], sizes = [1, 8], strides = [1, 1]} : vector<3x8xf32> to vector<1x8xf32>
    %50 = vector.broadcast %48 : vector<3x1xf32> to vector<3x8xf32>
    %51 = vector.broadcast %49 : vector<1x8xf32> to vector<3x8xf32>
    %52 = arith.mulf %50, %51 : vector<3x8xf32>
    %53 = arith.addf %47, %52 : vector<3x8xf32>
    %54 = vector.extract_strided_slice %6 {offsets = [0, 0], sizes = [3, 1], strides = [1, 1]} : vector<3x3xf32> to vector<3x1xf32>
    %55 = vector.extract_strided_slice %14 {offsets = [0, 0], sizes = [1, 8], strides = [1, 1]} : vector<3x8xf32> to vector<1x8xf32>
    %56 = vector.broadcast %54 : vector<3x1xf32> to vector<3x8xf32>
    %57 = vector.broadcast %55 : vector<1x8xf32> to vector<3x8xf32>
    %58 = arith.mulf %56, %57 : vector<3x8xf32>
    %59 = vector.extract_strided_slice %6 {offsets = [0, 1], sizes = [3, 1], strides = [1, 1]} : vector<3x3xf32> to vector<3x1xf32>
    %60 = vector.extract_strided_slice %14 {offsets = [1, 0], sizes = [1, 8], strides = [1, 1]} : vector<3x8xf32> to vector<1x8xf32>
    %61 = vector.broadcast %59 : vector<3x1xf32> to vector<3x8xf32>
    %62 = vector.broadcast %60 : vector<1x8xf32> to vector<3x8xf32>
    %63 = arith.mulf %61, %62 : vector<3x8xf32>
    %64 = arith.addf %58, %63 : vector<3x8xf32>
    %65 = vector.extract_strided_slice %6 {offsets = [0, 2], sizes = [3, 1], strides = [1, 1]} : vector<3x3xf32> to vector<3x1xf32>
    %66 = vector.extract_strided_slice %14 {offsets = [2, 0], sizes = [1, 8], strides = [1, 1]} : vector<3x8xf32> to vector<1x8xf32>
    %67 = vector.broadcast %65 : vector<3x1xf32> to vector<3x8xf32>
    %68 = vector.broadcast %66 : vector<1x8xf32> to vector<3x8xf32>
    %69 = arith.mulf %67, %68 : vector<3x8xf32>
    %70 = arith.addf %64, %69 : vector<3x8xf32>
    %cst_23 = arith.constant dense<0.000000e+00> : vector<3x8xf32>
    %71 = tpu.matmul %36, %0, %cst_23 {dimension_numbers = #tpu.dot_dimension_numbers<[1], [1], [0], [0], [0, 0, 1, 0], [], []>} : vector<3x8xf32>, vector<8x8xf32>, vector<3x8xf32> -> vector<3x8xf32>
    %72 = arith.mulf %53, %71 : vector<3x8xf32>
    %cst_24 = arith.constant dense<0.000000e+00> : vector<8x8xf32>
    %73 = tpu.matmul %17, %18, %cst_24 {dimension_numbers = #tpu.dot_dimension_numbers<[1], [1], [0], [0], [0, 0, 1, 0], [], []>} : vector<8x128xf32>, vector<8x128xf32>, vector<8x8xf32> -> vector<8x8xf32>
    %cst_25 = arith.constant 0.176776692 : f32
    %74 = vector.broadcast %cst_25 : f32 to vector<8x8xf32>
    %75 = arith.mulf %73, %74 : vector<8x8xf32>
    %cst_26 = arith.constant dense<0xFF800000> : vector<8xf32>
    %76 = vector.multi_reduction <maximumf>, %75, %cst_26 [1] : vector<8x8xf32> to vector<8xf32>
    %77 = vector.shape_cast %76 : vector<8xf32> to vector<8x1xf32>
    %78 = vector.broadcast %77 : vector<8x1xf32> to vector<8x8xf32>
    %79 = arith.subf %75, %78 : vector<8x8xf32>
    %80 = math.exp %79 : vector<8x8xf32>
    %cst_27 = arith.constant dense<0.000000e+00> : vector<8xf32>
    %81 = vector.multi_reduction <add>, %80, %cst_27 [1] : vector<8x8xf32> to vector<8xf32>
    %82 = vector.shape_cast %81 : vector<8xf32> to vector<8x1xf32>
    %cst_28 = arith.constant dense<0.000000e+00> : vector<8x128xf32>
    %83 = tpu.matmul %80, %18, %cst_28 {dimension_numbers = #tpu.dot_dimension_numbers<[1], [0], [0], [1], [0, 0, 1, 1], [], []>} : vector<8x8xf32>, vector<8x128xf32>, vector<8x128xf32> -> vector<8x128xf32>
    %cst_29 = arith.constant 1.000000e+00 : f32
    %84 = vector.broadcast %cst_29 : f32 to vector<8x1xf32>
    %85 = arith.divf %84, %82 : vector<8x1xf32>
    %86 = vector.broadcast %85 : vector<8x1xf32> to vector<8x128xf32>
    %87 = arith.mulf %83, %86 : vector<8x128xf32>
    %cst_30 = arith.constant dense<0.000000e+00> : vector<3x8xf32>
    %88 = tpu.matmul %7, %87, %cst_30 {dimension_numbers = #tpu.dot_dimension_numbers<[1], [1], [0], [0], [0, 0, 1, 0], [], []>} : vector<3x128xf32>, vector<8x128xf32>, vector<3x8xf32> -> vector<3x8xf32>
    %cst_31 = arith.constant dense<0.000000e+00> : vector<8x128xf32>
    %89 = tpu.matmul %72, %8, %cst_31 {dimension_numbers = #tpu.dot_dimension_numbers<[0], [0], [1], [1], [0, 1, 1, 1], [], []>} : vector<3x8xf32>, vector<3x128xf32>, vector<8x128xf32> -> vector<8x128xf32>
    %90 = arith.negf %88 : vector<3x8xf32>
    %91 = math.exp %90 : vector<3x8xf32>
    %cst_32 = arith.constant 1.000000e+00 : f32
    %92 = vector.broadcast %cst_32 : f32 to vector<3x8xf32>
    %93 = arith.addf %92, %91 : vector<3x8xf32>
    %94 = arith.divf %92, %93 : vector<3x8xf32>
    %95 = arith.mulf %94, %72 : vector<3x8xf32>
    %96 = arith.negf %89 : vector<8x128xf32>
    %97 = math.exp %96 : vector<8x128xf32>
    %cst_33 = arith.constant 1.000000e+00 : f32
    %98 = vector.broadcast %cst_33 : f32 to vector<8x128xf32>
    %99 = arith.addf %98, %97 : vector<8x128xf32>
    %100 = arith.divf %98, %99 : vector<8x128xf32>
    %101 = arith.mulf %100, %87 : vector<8x128xf32>
    %102 = vector.extract_strided_slice %95 {offsets = [0, 0], sizes = [1, 8], strides = [1, 1]} : vector<3x8xf32> to vector<1x8xf32>
    %103 = vector.extract_strided_slice %95 {offsets = [1, 0], sizes = [1, 8], strides = [1, 1]} : vector<3x8xf32> to vector<1x8xf32>
    %104 = vector.extract_strided_slice %95 {offsets = [2, 0], sizes = [1, 8], strides = [1, 1]} : vector<3x8xf32> to vector<1x8xf32>
    %105 = vector.extract_strided_slice %70 {offsets = [0, 0], sizes = [1, 8], strides = [1, 1]} : vector<3x8xf32> to vector<1x8xf32>
    %106 = vector.extract_strided_slice %70 {offsets = [1, 0], sizes = [1, 8], strides = [1, 1]} : vector<3x8xf32> to vector<1x8xf32>
    %107 = vector.extract_strided_slice %70 {offsets = [2, 0], sizes = [1, 8], strides = [1, 1]} : vector<3x8xf32> to vector<1x8xf32>
    %108 = arith.mulf %103, %107 : vector<1x8xf32>
    %109 = arith.mulf %104, %106 : vector<1x8xf32>
    %110 = arith.subf %108, %109 : vector<1x8xf32>
    %111 = arith.mulf %104, %105 : vector<1x8xf32>
    %112 = arith.mulf %102, %107 : vector<1x8xf32>
    %113 = arith.subf %111, %112 : vector<1x8xf32>
    %114 = arith.mulf %102, %106 : vector<1x8xf32>
    %115 = arith.mulf %103, %105 : vector<1x8xf32>
    %116 = arith.subf %114, %115 : vector<1x8xf32>
    %117 = tpu.concatenate %110, %113, %116 in 0 : vector<1x8xf32>, vector<1x8xf32>, vector<1x8xf32> -> vector<3x8xf32>
    %118 = arith.addf %14, %117 : vector<3x8xf32>
    %119 = arith.negf %118 : vector<3x8xf32>
    %120 = math.exp %119 : vector<3x8xf32>
    %cst_34 = arith.constant 1.000000e+00 : f32
    %121 = vector.broadcast %cst_34 : f32 to vector<3x8xf32>
    %122 = arith.addf %121, %120 : vector<3x8xf32>
    %123 = arith.divf %121, %122 : vector<3x8xf32>
    %124 = arith.mulf %118, %123 : vector<3x8xf32>
    %c0_35 = arith.constant 0 : index
    %c0_36 = arith.constant 0 : index
    %c0_37 = arith.constant 0 : index
    %125 = vector.load %arg8[%c0_35, %c0_36, %c0_37] : memref<2x3x8xf32, #tpu.memory_space<vmem>>, vector<1x3x8xf32>
    %126 = vector.shape_cast %125 : vector<1x3x8xf32> to vector<3x8xf32>
    %127 = vector.shape_cast %124 : vector<3x8xf32> to vector<1x3x8xf32>
    tpu.vector_store %arg8[%c0_35, %c0_36, %c0_37], %127 {strides = array<i32>} : memref<2x3x8xf32, #tpu.memory_space<vmem>>, vector<1x3x8xf32>,
    %128 = arith.mulf %101, %19 : vector<8x128xf32>
    %cst_38 = arith.constant dense<0.000000e+00> : vector<8xf32>
    %129 = vector.multi_reduction <add>, %128, %cst_38 [1] : vector<8x128xf32> to vector<8xf32>
    %130 = vector.shape_cast %129 : vector<8xf32> to vector<8x1xf32>
    %131 = vector.broadcast %130 : vector<8x1xf32> to vector<8x128xf32>
    %132 = arith.addf %16, %131 : vector<8x128xf32>
    %133 = arith.negf %132 : vector<8x128xf32>
    %134 = math.exp %133 : vector<8x128xf32>
    %cst_39 = arith.constant 1.000000e+00 : f32
    %135 = vector.broadcast %cst_39 : f32 to vector<8x128xf32>
    %136 = arith.addf %135, %134 : vector<8x128xf32>
    %137 = arith.divf %135, %136 : vector<8x128xf32>
    %138 = arith.mulf %132, %137 : vector<8x128xf32>
    %c0_40 = arith.constant 0 : index
    %c0_41 = arith.constant 0 : index
    %c0_42 = arith.constant 0 : index
    %139 = vector.load %arg9[%c0_40, %c0_41, %c0_42] : memref<2x8x128xf32, #tpu.memory_space<vmem>>, vector<1x8x128xf32>
    %140 = vector.shape_cast %139 : vector<1x8x128xf32> to vector<8x128xf32>
    %141 = vector.shape_cast %138 : vector<8x128xf32> to vector<1x8x128xf32>
    tpu.vector_store %arg9[%c0_40, %c0_41, %c0_42], %141 {strides = array<i32>} : memref<2x8x128xf32, #tpu.memory_space<vmem>>, vector<1x8x128xf32>,
    %c1_43 = arith.constant 1 : index
    %c0_44 = arith.constant 0 : index
    %c0_45 = arith.constant 0 : index
    %142 = vector.load %arg1[%c1_43, %c0_44, %c0_45] : memref<2x3x8xf32, #tpu.memory_space<vmem>>, vector<1x3x8xf32>
    %143 = vector.shape_cast %142 : vector<1x3x8xf32> to vector<3x8xf32>
    %c1_46 = arith.constant 1 : index
    %c0_47 = arith.constant 0 : index
    %c0_48 = arith.constant 0 : index
    %144 = vector.load %arg2[%c1_46, %c0_47, %c0_48] : memref<2x8x128xf32, #tpu.memory_space<vmem>>, vector<1x8x128xf32>
    %145 = vector.shape_cast %144 : vector<1x8x128xf32> to vector<8x128xf32>
    %146 = vector.extract_strided_slice %12 {offsets = [8, 0], sizes = [8, 128], strides = [1, 1]} : vector<16x384xf32> to vector<8x128xf32>
    %147 = vector.extract_strided_slice %12 {offsets = [8, 128], sizes = [8, 128], strides = [1, 1]} : vector<16x384xf32> to vector<8x128xf32>
    %148 = vector.extract_strided_slice %12 {offsets = [8, 256], sizes = [8, 128], strides = [1, 1]} : vector<16x384xf32> to vector<8x128xf32>
    %149 = vector.extract_strided_slice %2 {offsets = [0, 0], sizes = [3, 1], strides = [1, 1]} : vector<3x3xf32> to vector<3x1xf32>
    %150 = vector.extract_strided_slice %143 {offsets = [0, 0], sizes = [1, 8], strides = [1, 1]} : vector<3x8xf32> to vector<1x8xf32>
    %151 = vector.broadcast %149 : vector<3x1xf32> to vector<3x8xf32>
    %152 = vector.broadcast %150 : vector<1x8xf32> to vector<3x8xf32>
    %153 = arith.mulf %151, %152 : vector<3x8xf32>
    %154 = vector.extract_strided_slice %2 {offsets = [0, 1], sizes = [3, 1], strides = [1, 1]} : vector<3x3xf32> to vector<3x1xf32>
    %155 = vector.extract_strided_slice %143 {offsets = [1, 0], sizes = [1, 8], strides = [1, 1]} : vector<3x8xf32> to vector<1x8xf32>
    %156 = vector.broadcast %154 : vector<3x1xf32> to vector<3x8xf32>
    %157 = vector.broadcast %155 : vector<1x8xf32> to vector<3x8xf32>
    %158 = arith.mulf %156, %157 : vector<3x8xf32>
    %159 = arith.addf %153, %158 : vector<3x8xf32>
    %160 = vector.extract_strided_slice %2 {offsets = [0, 2], sizes = [3, 1], strides = [1, 1]} : vector<3x3xf32> to vector<3x1xf32>
    %161 = vector.extract_strided_slice %143 {offsets = [2, 0], sizes = [1, 8], strides = [1, 1]} : vector<3x8xf32> to vector<1x8xf32>
    %162 = vector.broadcast %160 : vector<3x1xf32> to vector<3x8xf32>
    %163 = vector.broadcast %161 : vector<1x8xf32> to vector<3x8xf32>
    %164 = arith.mulf %162, %163 : vector<3x8xf32>
    %165 = arith.addf %159, %164 : vector<3x8xf32>
    %166 = vector.extract_strided_slice %4 {offsets = [0, 0], sizes = [3, 1], strides = [1, 1]} : vector<3x3xf32> to vector<3x1xf32>
    %167 = vector.extract_strided_slice %143 {offsets = [0, 0], sizes = [1, 8], strides = [1, 1]} : vector<3x8xf32> to vector<1x8xf32>
    %168 = vector.broadcast %166 : vector<3x1xf32> to vector<3x8xf32>
    %169 = vector.broadcast %167 : vector<1x8xf32> to vector<3x8xf32>
    %170 = arith.mulf %168, %169 : vector<3x8xf32>
    %171 = vector.extract_strided_slice %4 {offsets = [0, 1], sizes = [3, 1], strides = [1, 1]} : vector<3x3xf32> to vector<3x1xf32>
    %172 = vector.extract_strided_slice %143 {offsets = [1, 0], sizes = [1, 8], strides = [1, 1]} : vector<3x8xf32> to vector<1x8xf32>
    %173 = vector.broadcast %171 : vector<3x1xf32> to vector<3x8xf32>
    %174 = vector.broadcast %172 : vector<1x8xf32> to vector<3x8xf32>
    %175 = arith.mulf %173, %174 : vector<3x8xf32>
    %176 = arith.addf %170, %175 : vector<3x8xf32>
    %177 = vector.extract_strided_slice %4 {offsets = [0, 2], sizes = [3, 1], strides = [1, 1]} : vector<3x3xf32> to vector<3x1xf32>
    %178 = vector.extract_strided_slice %143 {offsets = [2, 0], sizes = [1, 8], strides = [1, 1]} : vector<3x8xf32> to vector<1x8xf32>
    %179 = vector.broadcast %177 : vector<3x1xf32> to vector<3x8xf32>
    %180 = vector.broadcast %178 : vector<1x8xf32> to vector<3x8xf32>
    %181 = arith.mulf %179, %180 : vector<3x8xf32>
    %182 = arith.addf %176, %181 : vector<3x8xf32>
    %183 = vector.extract_strided_slice %6 {offsets = [0, 0], sizes = [3, 1], strides = [1, 1]} : vector<3x3xf32> to vector<3x1xf32>
    %184 = vector.extract_strided_slice %143 {offsets = [0, 0], sizes = [1, 8], strides = [1, 1]} : vector<3x8xf32> to vector<1x8xf32>
    %185 = vector.broadcast %183 : vector<3x1xf32> to vector<3x8xf32>
    %186 = vector.broadcast %184 : vector<1x8xf32> to vector<3x8xf32>
    %187 = arith.mulf %185, %186 : vector<3x8xf32>
    %188 = vector.extract_strided_slice %6 {offsets = [0, 1], sizes = [3, 1], strides = [1, 1]} : vector<3x3xf32> to vector<3x1xf32>
    %189 = vector.extract_strided_slice %143 {offsets = [1, 0], sizes = [1, 8], strides = [1, 1]} : vector<3x8xf32> to vector<1x8xf32>
    %190 = vector.broadcast %188 : vector<3x1xf32> to vector<3x8xf32>
    %191 = vector.broadcast %189 : vector<1x8xf32> to vector<3x8xf32>
    %192 = arith.mulf %190, %191 : vector<3x8xf32>
    %193 = arith.addf %187, %192 : vector<3x8xf32>
    %194 = vector.extract_strided_slice %6 {offsets = [0, 2], sizes = [3, 1], strides = [1, 1]} : vector<3x3xf32> to vector<3x1xf32>
    %195 = vector.extract_strided_slice %143 {offsets = [2, 0], sizes = [1, 8], strides = [1, 1]} : vector<3x8xf32> to vector<1x8xf32>
    %196 = vector.broadcast %194 : vector<3x1xf32> to vector<3x8xf32>
    %197 = vector.broadcast %195 : vector<1x8xf32> to vector<3x8xf32>
    %198 = arith.mulf %196, %197 : vector<3x8xf32>
    %199 = arith.addf %193, %198 : vector<3x8xf32>
    %cst_49 = arith.constant dense<0.000000e+00> : vector<3x8xf32>
    %200 = tpu.matmul %165, %0, %cst_49 {dimension_numbers = #tpu.dot_dimension_numbers<[1], [1], [0], [0], [0, 0, 1, 0], [], []>} : vector<3x8xf32>, vector<8x8xf32>, vector<3x8xf32> -> vector<3x8xf32>
    %201 = arith.mulf %182, %200 : vector<3x8xf32>
    %cst_50 = arith.constant dense<0.000000e+00> : vector<8x8xf32>
    %202 = tpu.matmul %146, %147, %cst_50 {dimension_numbers = #tpu.dot_dimension_numbers<[1], [1], [0], [0], [0, 0, 1, 0], [], []>} : vector<8x128xf32>, vector<8x128xf32>, vector<8x8xf32> -> vector<8x8xf32>
    %cst_51 = arith.constant 0.176776692 : f32
    %203 = vector.broadcast %cst_51 : f32 to vector<8x8xf32>
    %204 = arith.mulf %202, %203 : vector<8x8xf32>
    %cst_52 = arith.constant dense<0xFF800000> : vector<8xf32>
    %205 = vector.multi_reduction <maximumf>, %204, %cst_52 [1] : vector<8x8xf32> to vector<8xf32>
    %206 = vector.shape_cast %205 : vector<8xf32> to vector<8x1xf32>
    %207 = vector.broadcast %206 : vector<8x1xf32> to vector<8x8xf32>
    %208 = arith.subf %204, %207 : vector<8x8xf32>
    %209 = math.exp %208 : vector<8x8xf32>
    %cst_53 = arith.constant dense<0.000000e+00> : vector<8xf32>
    %210 = vector.multi_reduction <add>, %209, %cst_53 [1] : vector<8x8xf32> to vector<8xf32>
    %211 = vector.shape_cast %210 : vector<8xf32> to vector<8x1xf32>
    %cst_54 = arith.constant dense<0.000000e+00> : vector<8x128xf32>
    %212 = tpu.matmul %209, %147, %cst_54 {dimension_numbers = #tpu.dot_dimension_numbers<[1], [0], [0], [1], [0, 0, 1, 1], [], []>} : vector<8x8xf32>, vector<8x128xf32>, vector<8x128xf32> -> vector<8x128xf32>
    %cst_55 = arith.constant 1.000000e+00 : f32
    %213 = vector.broadcast %cst_55 : f32 to vector<8x1xf32>
    %214 = arith.divf %213, %211 : vector<8x1xf32>
    %215 = vector.broadcast %214 : vector<8x1xf32> to vector<8x128xf32>
    %216 = arith.mulf %212, %215 : vector<8x128xf32>
    %cst_56 = arith.constant dense<0.000000e+00> : vector<3x8xf32>
    %217 = tpu.matmul %7, %216, %cst_56 {dimension_numbers = #tpu.dot_dimension_numbers<[1], [1], [0], [0], [0, 0, 1, 0], [], []>} : vector<3x128xf32>, vector<8x128xf32>, vector<3x8xf32> -> vector<3x8xf32>
    %cst_57 = arith.constant dense<0.000000e+00> : vector<8x128xf32>
    %218 = tpu.matmul %201, %8, %cst_57 {dimension_numbers = #tpu.dot_dimension_numbers<[0], [0], [1], [1], [0, 1, 1, 1], [], []>} : vector<3x8xf32>, vector<3x128xf32>, vector<8x128xf32> -> vector<8x128xf32>
    %219 = arith.negf %217 : vector<3x8xf32>
    %220 = math.exp %219 : vector<3x8xf32>
    %cst_58 = arith.constant 1.000000e+00 : f32
    %221 = vector.broadcast %cst_58 : f32 to vector<3x8xf32>
    %222 = arith.addf %221, %220 : vector<3x8xf32>
    %223 = arith.divf %221, %222 : vector<3x8xf32>
    %224 = arith.mulf %223, %201 : vector<3x8xf32>
    %225 = arith.negf %218 : vector<8x128xf32>
    %226 = math.exp %225 : vector<8x128xf32>
    %cst_59 = arith.constant 1.000000e+00 : f32
    %227 = vector.broadcast %cst_59 : f32 to vector<8x128xf32>
    %228 = arith.addf %227, %226 : vector<8x128xf32>
    %229 = arith.divf %227, %228 : vector<8x128xf32>
    %230 = arith.mulf %229, %216 : vector<8x128xf32>
    %231 = vector.extract_strided_slice %224 {offsets = [0, 0], sizes = [1, 8], strides = [1, 1]} : vector<3x8xf32> to vector<1x8xf32>
    %232 = vector.extract_strided_slice %224 {offsets = [1, 0], sizes = [1, 8], strides = [1, 1]} : vector<3x8xf32> to vector<1x8xf32>
    %233 = vector.extract_strided_slice %224 {offsets = [2, 0], sizes = [1, 8], strides = [1, 1]} : vector<3x8xf32> to vector<1x8xf32>
    %234 = vector.extract_strided_slice %199 {offsets = [0, 0], sizes = [1, 8], strides = [1, 1]} : vector<3x8xf32> to vector<1x8xf32>
    %235 = vector.extract_strided_slice %199 {offsets = [1, 0], sizes = [1, 8], strides = [1, 1]} : vector<3x8xf32> to vector<1x8xf32>
    %236 = vector.extract_strided_slice %199 {offsets = [2, 0], sizes = [1, 8], strides = [1, 1]} : vector<3x8xf32> to vector<1x8xf32>
    %237 = arith.mulf %232, %236 : vector<1x8xf32>
    %238 = arith.mulf %233, %235 : vector<1x8xf32>
    %239 = arith.subf %237, %238 : vector<1x8xf32>
    %240 = arith.mulf %233, %234 : vector<1x8xf32>
    %241 = arith.mulf %231, %236 : vector<1x8xf32>
    %242 = arith.subf %240, %241 : vector<1x8xf32>
    %243 = arith.mulf %231, %235 : vector<1x8xf32>
    %244 = arith.mulf %232, %234 : vector<1x8xf32>
    %245 = arith.subf %243, %244 : vector<1x8xf32>
    %246 = tpu.concatenate %239, %242, %245 in 0 : vector<1x8xf32>, vector<1x8xf32>, vector<1x8xf32> -> vector<3x8xf32>
    %247 = arith.addf %143, %246 : vector<3x8xf32>
    %248 = arith.negf %247 : vector<3x8xf32>
    %249 = math.exp %248 : vector<3x8xf32>
    %cst_60 = arith.constant 1.000000e+00 : f32
    %250 = vector.broadcast %cst_60 : f32 to vector<3x8xf32>
    %251 = arith.addf %250, %249 : vector<3x8xf32>
    %252 = arith.divf %250, %251 : vector<3x8xf32>
    %253 = arith.mulf %247, %252 : vector<3x8xf32>
    %c1_61 = arith.constant 1 : index
    %c0_62 = arith.constant 0 : index
    %c0_63 = arith.constant 0 : index
    %254 = vector.load %arg8[%c1_61, %c0_62, %c0_63] : memref<2x3x8xf32, #tpu.memory_space<vmem>>, vector<1x3x8xf32>
    %255 = vector.shape_cast %254 : vector<1x3x8xf32> to vector<3x8xf32>
    %256 = vector.shape_cast %253 : vector<3x8xf32> to vector<1x3x8xf32>
    tpu.vector_store %arg8[%c1_61, %c0_62, %c0_63], %256 {strides = array<i32>} : memref<2x3x8xf32, #tpu.memory_space<vmem>>, vector<1x3x8xf32>,
    %257 = arith.mulf %230, %148 : vector<8x128xf32>
    %cst_64 = arith.constant dense<0.000000e+00> : vector<8xf32>
    %258 = vector.multi_reduction <add>, %257, %cst_64 [1] : vector<8x128xf32> to vector<8xf32>
    %259 = vector.shape_cast %258 : vector<8xf32> to vector<8x1xf32>
    %260 = vector.broadcast %259 : vector<8x1xf32> to vector<8x128xf32>
    %261 = arith.addf %145, %260 : vector<8x128xf32>
    %262 = arith.negf %261 : vector<8x128xf32>
    %263 = math.exp %262 : vector<8x128xf32>
    %cst_65 = arith.constant 1.000000e+00 : f32
    %264 = vector.broadcast %cst_65 : f32 to vector<8x128xf32>
    %265 = arith.addf %264, %263 : vector<8x128xf32>
    %266 = arith.divf %264, %265 : vector<8x128xf32>
    %267 = arith.mulf %261, %266 : vector<8x128xf32>
    %c1_66 = arith.constant 1 : index
    %c0_67 = arith.constant 0 : index
    %c0_68 = arith.constant 0 : index
    %268 = vector.load %arg9[%c1_66, %c0_67, %c0_68] : memref<2x8x128xf32, #tpu.memory_space<vmem>>, vector<1x8x128xf32>
    %269 = vector.shape_cast %268 : vector<1x8x128xf32> to vector<8x128xf32>
    %270 = vector.shape_cast %267 : vector<8x128xf32> to vector<1x8x128xf32>
    tpu.vector_store %arg9[%c1_66, %c0_67, %c0_68], %270 {strides = array<i32>} : memref<2x8x128xf32, #tpu.memory_space<vmem>>, vector<1x8x128xf32>,
    return
  }
  func.func @transform_0(%arg0: i32) -> (i32, i32, i32) {
    %c0_i32 = arith.constant 0 : i32
    %c0_i32_0 = arith.constant 0 : i32
    %c0_i32_1 = arith.constant 0 : i32
    return %arg0, %c0_i32, %c0_i32_0 : i32, i32, i32
  }
  func.func @transform_1(%arg0: i32) -> (i32, i32, i32) {
    %c0_i32 = arith.constant 0 : i32
    %c0_i32_0 = arith.constant 0 : i32
    %c0_i32_1 = arith.constant 0 : i32
    return %arg0, %c0_i32, %c0_i32_0 : i32, i32, i32
  }
  func.func @transform_2(%arg0: i32) -> (i32, i32, i32) {
    %c0_i32 = arith.constant 0 : i32
    %c0_i32_0 = arith.constant 0 : i32
    %c0_i32_1 = arith.constant 0 : i32
    %c0_i32_2 = arith.constant 0 : i32
    return %c0_i32, %c0_i32_0, %c0_i32_1 : i32, i32, i32
  }
  func.func @transform_3(%arg0: i32) -> (i32, i32) {
    %c0_i32 = arith.constant 0 : i32
    %c0_i32_0 = arith.constant 0 : i32
    %c0_i32_1 = arith.constant 0 : i32
    return %c0_i32, %c0_i32_0 : i32, i32
  }
  func.func @transform_4(%arg0: i32) -> (i32, i32) {
    %c0_i32 = arith.constant 0 : i32
    %c0_i32_0 = arith.constant 0 : i32
    %c0_i32_1 = arith.constant 0 : i32
    return %c0_i32, %c0_i32_0 : i32, i32
  }
  func.func @transform_5(%arg0: i32) -> (i32, i32) {
    %c0_i32 = arith.constant 0 : i32
    %c0_i32_0 = arith.constant 0 : i32
    %c0_i32_1 = arith.constant 0 : i32
    return %c0_i32, %c0_i32_0 : i32, i32
  }
  func.func @transform_6(%arg0: i32) -> (i32, i32) {
    %c0_i32 = arith.constant 0 : i32
    %c0_i32_0 = arith.constant 0 : i32
    %c0_i32_1 = arith.constant 0 : i32
    return %c0_i32, %c0_i32_0 : i32, i32
  }
  func.func @transform_7(%arg0: i32) -> (i32, i32, i32) {
    %c0_i32 = arith.constant 0 : i32
    %c0_i32_0 = arith.constant 0 : i32
    %c0_i32_1 = arith.constant 0 : i32
    return %arg0, %c0_i32, %c0_i32_0 : i32, i32, i32
  }
  func.func @transform_8(%arg0: i32) -> (i32, i32, i32) {
    %c0_i32 = arith.constant 0 : i32
    %c0_i32_0 = arith.constant 0 : i32
    %c0_i32_1 = arith.constant 0 : i32
    return %arg0, %c0_i32, %c0_i32_0 : i32, i32, i32
  }
}

</mosaic_0001>

<llo_original>
// kernel: clifford_se3_hyena.1
$region0: #{clifford_se3_hyena.1}
  #allocation0 [shape = 'u32[]', space=smem, size = 0x4, offset = 0x4, fixed_abs, tag = 'smem constant byte address 0x4 - core index']
  #allocation1 [shape = 'u32[144,128]{1,0:T(1,128)}', space=vmem, size = 0x12000, scoped, tag = 'internal scratch']
  %s0 = inlined_call_operand.vmem [shape: f32[2,3,8], index: 0, kind: input, shape index: {}]
  %s1 = inlined_call_operand.vmem [shape: f32[2,8,128], index: 1, kind: input, shape index: {}]
  %s2 = inlined_call_operand.vmem [shape: f32[3,3,3], index: 2, kind: input, shape index: {}]
  %s3 = inlined_call_operand.vmem [shape: f32[128,384], index: 3, kind: input, shape index: {}]
  %s4 = inlined_call_operand.vmem [shape: f32[8,8], index: 4, kind: input, shape index: {}]
  %s5 = inlined_call_operand.vmem [shape: f32[3,128], index: 5, kind: input, shape index: {}]
  %s6 = inlined_call_operand.vmem [shape: f32[3,128], index: 6, kind: input, shape index: {}]
  %s7 = inlined_call_operand.vmem [shape: f32[2,3,8], index: 7, kind: output, shape index: {0}]
  %s8 = inlined_call_operand.hbm [shape: f32[2,8,128], index: 8, kind: output, shape index: {1}]
  %9 = xla_tuple %s7, %s8
  %s10 = sld [smem:[#allocation0]]
  $region46: #{clifford_se3_hyena.1} parent=0
    _
  %s12 = ssub.s32 1, %s10
  %s13 = scalar_select 0, %s12, %s10
  $region1: #{clifford_se3_hyena.1} parent=0
    #allocation2 [shape = 'u8[8192]{0}', space=vmem, size = 0x2000, scoped, tag = 'output window, operand 1, single buffered']
    #allocation3 [shape = 's32[1]{0}', space=sflag, size = 0x4, scoped, tag = 'scoped memory for clifford_se3_hyena.1']
    %14 = vsyncpa [#allocation3], 0
    // Predicated region
    $region2: #{clifford_se3_hyena.1} parent=1 // pred_check
      _
    $region3: #{clifford_se3_hyena.1} parent=1 // pred_check_branch
      %16 = sbr.rel (0) target = $region5
    $region4: #{clifford_se3_hyena.1} parent=1 // pred_region
      _
    $region5: #{clifford_se3_hyena.1} parent=1 // pred_fallthru
      _
    // Predicated region
    $region6: #{clifford_se3_hyena.1} parent=1 // pred_check
      _
    $region7: #{clifford_se3_hyena.1} parent=1 // pred_check_branch
      %18 = sbr.rel (0) target = $region9
    $region8: #{clifford_se3_hyena.1} parent=1 // pred_region
      _
    $region9: #{clifford_se3_hyena.1} parent=1 // pred_fallthru
      _
    // Predicated region
    $region10: #{clifford_se3_hyena.1} parent=1 // pred_check
      _
    $region11: #{clifford_se3_hyena.1} parent=1 // pred_check_branch
      %20 = sbr.rel (0) target = $region13
    $region12: #{clifford_se3_hyena.1} parent=1 // pred_region
      _
    $region13: #{clifford_se3_hyena.1} parent=1 // pred_fallthru
      _
    // Predicated region
    $region14: #{clifford_se3_hyena.1} parent=1 // pred_check
      _
    $region15: #{clifford_se3_hyena.1} parent=1 // pred_check_branch
      %22 = sbr.rel (0) target = $region17
    $region16: #{clifford_se3_hyena.1} parent=1 // pred_region
      _
    $region17: #{clifford_se3_hyena.1} parent=1 // pred_fallthru
      _
    // Predicated region
    $region18: #{clifford_se3_hyena.1} parent=1 // pred_check
      _
    $region19: #{clifford_se3_hyena.1} parent=1 // pred_check_branch
      %24 = sbr.rel (0) target = $region21
    $region20: #{clifford_se3_hyena.1} parent=1 // pred_region
      _
    $region21: #{clifford_se3_hyena.1} parent=1 // pred_fallthru
      _
    // Predicated region
    $region22: #{clifford_se3_hyena.1} parent=1 // pred_check
      _
    $region23: #{clifford_se3_hyena.1} parent=1 // pred_check_branch
      %26 = sbr.rel (0) target = $region25
    $region24: #{clifford_se3_hyena.1} parent=1 // pred_region
      _
    $region25: #{clifford_se3_hyena.1} parent=1 // pred_fallthru
      _
    // Predicated region
    $region26: #{clifford_se3_hyena.1} parent=1 // pred_check
      _
    $region27: #{clifford_se3_hyena.1} parent=1 // pred_check_branch
      %28 = sbr.rel (0) target = $region29
    $region28: #{clifford_se3_hyena.1} parent=1 // pred_region
      _
    $region29: #{clifford_se3_hyena.1} parent=1 // pred_fallthru
      _
    %v29 = vld [vmem:[%s4] sm:$0xff]
    %v30 = vld [vmem:[%s2] sm:$0x7]
    %s31 = scalar_lea.vmem %s2, 4
    %v32 = vld [vmem:[%s31] sm:$0x7]
    %s33 = scalar_lea.vmem %s2, 8
    %v34 = vld [vmem:[%s33] sm:$0x7]
    %v35 = vld [vmem:[%s5] sm:$0x7]
    %v36 = vld [vmem:[%s6] sm:$0x7]
    %v37 = vld [vmem:[%s1] sm:$0xff]
    %v38 = vld [vmem:[%s1 + $0x8] sm:$0xff]
    %v39 = vld [vmem:[%s3] sm:$0xff]
    %v40 = vld [vmem:[%s3 + $0x8] sm:$0xff]
    %v41 = vld [vmem:[%s3 + $0x10] sm:$0xff]
    %v42 = vld [vmem:[%s3 + $0x18] sm:$0xff]
    %v43 = vld [vmem:[%s3 + $0x20] sm:$0xff]
    %v44 = vld [vmem:[%s3 + $0x28] sm:$0xff]
    %v45 = vld [vmem:[%s3 + $0x30] sm:$0xff]
    %v46 = vld [vmem:[%s3 + $0x38] sm:$0xff]
    %v47 = vld [vmem:[%s3 + $0x40] sm:$0xff]
    %v48 = vld [vmem:[%s3 + $0x48] sm:$0xff]
    %v49 = vld [vmem:[%s3 + $0x50] sm:$0xff]
    %v50 = vld [vmem:[%s3 + $0x58] sm:$0xff]
    %v51 = vld [vmem:[%s3 + $0x60] sm:$0xff]
    %v52 = vld [vmem:[%s3 + $0x68] sm:$0xff]
    %v53 = vld [vmem:[%s3 + $0x70] sm:$0xff]
    %v54 = vld [vmem:[%s3 + $0x78] sm:$0xff]
    %v55 = vld [vmem:[%s3 + $0x80] sm:$0xff]
    %v56 = vld [vmem:[%s3 + $0x88] sm:$0xff]
    %v57 = vld [vmem:[%s3 + $0x90] sm:$0xff]
    %v58 = vld [vmem:[%s3 + $0x98] sm:$0xff]
    %v59 = vld [vmem:[%s3 + $0xa0] sm:$0xff]
    %v60 = vld [vmem:[%s3 + $0xa8] sm:$0xff]
    %v61 = vld [vmem:[%s3 + $0xb0] sm:$0xff]
    %v62 = vld [vmem:[%s3 + $0xb8] sm:$0xff]
    %v63 = vld [vmem:[%s3 + $0xc0] sm:$0xff]
    %v64 = vld [vmem:[%s3 + $0xc8] sm:$0xff]
    %v65 = vld [vmem:[%s3 + $0xd0] sm:$0xff]
    %v66 = vld [vmem:[%s3 + $0xd8] sm:$0xff]
    %v67 = vld [vmem:[%s3 + $0xe0] sm:$0xff]
    %v68 = vld [vmem:[%s3 + $0xe8] sm:$0xff]
    %v69 = vld [vmem:[%s3 + $0xf0] sm:$0xff]
    %v70 = vld [vmem:[%s3 + $0xf8] sm:$0xff]
    %v71 = vld [vmem:[%s3 + $0x100] sm:$0xff]
    %v72 = vld [vmem:[%s3 + $0x108] sm:$0xff]
    %v73 = vld [vmem:[%s3 + $0x110] sm:$0xff]
    %v74 = vld [vmem:[%s3 + $0x118] sm:$0xff]
    %v75 = vld [vmem:[%s3 + $0x120] sm:$0xff]
    %v76 = vld [vmem:[%s3 + $0x128] sm:$0xff]
    %v77 = vld [vmem:[%s3 + $0x130] sm:$0xff]
    %v78 = vld [vmem:[%s3 + $0x138] sm:$0xff]
    %v79 = vld [vmem:[%s3 + $0x140] sm:$0xff]
    %v80 = vld [vmem:[%s3 + $0x148] sm:$0xff]
    %v81 = vld [vmem:[%s3 + $0x150] sm:$0xff]
    %v82 = vld [vmem:[%s3 + $0x158] sm:$0xff]
    %v83 = vld [vmem:[%s3 + $0x160] sm:$0xff]
    %v84 = vld [vmem:[%s3 + $0x168] sm:$0xff]
    %v85 = vld [vmem:[%s3 + $0x170] sm:$0xff]
    %v86 = vld [vmem:[%s3 + $0x178] sm:$0xff]
    %87 = vmatprep.subr.mxu0 %v40
    %88 = vmatpush1.msra.mxu0 %v39
    %89 = vmatprep.subr.mxu0 %v43
    %90 = vmatpush1.msra.mxu0 %v42
    %91 = vmatprep.subr.mxu0 %v46
    %92 = vmatpush1.msra.mxu0 %v45
    %93 = vmatprep.subr.mxu0 %v49
    %94 = vmatpush1.msra.mxu0 %v48
    %95 = vmatprep.subr.mxu0 %v52
    %96 = vmatpush1.msra.mxu0 %v51
    %97 = vmatprep.subr.mxu0 %v55
    %98 = vmatpush1.msra.mxu0 %v54
    %99 = vmatprep.subr.mxu0 %v58
    %100 = vmatpush1.msra.mxu0 %v57
    %101 = vmatprep.subr.mxu0 %v61
    %102 = vmatpush1.msra.mxu0 %v60
    %103 = vmatprep.subr.mxu0 %v64
    %104 = vmatpush1.msra.mxu0 %v63
    %105 = vmatprep.subr.mxu0 %v67
    %106 = vmatpush1.msra.mxu0 %v66
    %107 = vmatprep.subr.mxu0 %v70
    %108 = vmatpush1.msra.mxu0 %v69
    %109 = vmatprep.subr.mxu0 %v73
    %110 = vmatpush1.msra.mxu0 %v72
    %111 = vmatprep.subr.mxu0 %v76
    %112 = vmatpush1.msra.mxu0 %v75
    %113 = vmatprep.subr.mxu0 %v79
    %114 = vmatpush1.msra.mxu0 %v78
    %115 = vmatprep.subr.mxu0 %v82
    %116 = vmatpush1.msra.mxu0 %v81
    %117 = vmatprep.subr.mxu0 %v85
    %118 = vmatpush1.msra.mxu0 %v84
    %119 = vmatprep.subr.mxu0 0.0
    %120 = vmatpush1.msra.mxu0 0.0
    %121 = vmatprep.subr.mxu0 0.0
    %122 = vmatpush1.msra.mxu0 0.0
    %123 = vmatprep.subr.mxu0 0.0
    %124 = vmatpush1.msra.mxu0 0.0
    %125 = vmatprep.subr.mxu0 0.0
    %126 = vmatpush1.msra.mxu0 0.0
    %127 = vmatprep.subr.mxu0 0.0
    %128 = vmatpush1.msra.mxu0 0.0
    %129 = vmatprep.subr.mxu0 0.0
    %130 = vmatpush1.msra.mxu0 0.0
    %131 = vmatprep.subr.mxu0 0.0
    %132 = vmatpush1.msra.mxu0 0.0
    %133 = vmatprep.subr.mxu0 0.0
    %134 = vmatpush1.msra.mxu0 0.0
    %135 = vmatprep.subr.mxu0 0.0
    %136 = vmatpush1.msra.mxu0 0.0
    %137 = vmatprep.subr.mxu0 0.0
    %138 = vmatpush1.msra.mxu0 0.0
    %139 = vmatprep.subr.mxu0 0.0
    %140 = vmatpush1.msra.mxu0 0.0
    %141 = vmatprep.subr.mxu0 0.0
    %142 = vmatpush1.msra.mxu0 0.0
    %143 = vmatprep.subr.mxu0 0.0
    %144 = vmatpush1.msra.mxu0 0.0
    %145 = vmatprep.subr.mxu0 0.0
    %146 = vmatpush1.msra.mxu0 0.0
    %147 = vmatprep.subr.mxu0 0.0
    %148 = vmatpush1.msra.mxu0 0.0
    %149 = vmatprep.subr.mxu0 0.0
    %150 = vmatpush1.msra.mxu0 0.0
    %151 = vmatprep.mubr.f32.mxu0 0.0
    %152 = vmatmul.mubr.f32.gmra.mrb[0].mxu0 %v37
    %v153 = vpop.f32.mrb[0].mxu0
    %v154 = vadd.f32 0.0, %v153
    %v155 = vpop.f32.mrb[0].mxu0
    %v156 = vadd.f32 0.0, %v155
    %157 = vmatprep.mubr.f32.mxu0 0.0
    %158 = vmatmul.mubr.f32.gmra.mrb[0].mxu0 %v38
    %v159 = vpop.f32.mrb[0].mxu0
    %v160 = vadd.f32 0.0, %v159
    %v161 = vpop.f32.mrb[0].mxu0
    %v162 = vadd.f32 0.0, %v161
    %163 = vdwg.mxu0
    %164 = vmatprep.subr.mxu0 0.0
    %165 = vmatpush1.msra.mxu0 %v41
    %166 = vmatprep.subr.mxu0 0.0
    %167 = vmatpush1.msra.mxu0 %v44
    %168 = vmatprep.subr.mxu0 0.0
    %169 = vmatpush1.msra.mxu0 %v47
    %170 = vmatprep.subr.mxu0 0.0
    %171 = vmatpush1.msra.mxu0 %v50
    %172 = vmatprep.subr.mxu0 0.0
    %173 = vmatpush1.msra.mxu0 %v53
    %174 = vmatprep.subr.mxu0 0.0
    %175 = vmatpush1.msra.mxu0 %v56
    %176 = vmatprep.subr.mxu0 0.0
    %177 = vmatpush1.msra.mxu0 %v59
    %178 = vmatprep.subr.mxu0 0.0
    %179 = vmatpush1.msra.mxu0 %v62
    %180 = vmatprep.subr.mxu0 0.0
    %181 = vmatpush1.msra.mxu0 %v65
    %182 = vmatprep.subr.mxu0 0.0
    %183 = vmatpush1.msra.mxu0 %v68
    %184 = vmatprep.subr.mxu0 0.0
    %185 = vmatpush1.msra.mxu0 %v71
    %186 = vmatprep.subr.mxu0 0.0
    %187 = vmatpush1.msra.mxu0 %v74
    %188 = vmatprep.subr.mxu0 0.0
    %189 = vmatpush1.msra.mxu0 %v77
    %190 = vmatprep.subr.mxu0 0.0
    %191 = vmatpush1.msra.mxu0 %v80
    %192 = vmatprep.subr.mxu0 0.0
    %193 = vmatpush1.msra.mxu0 %v83
    %194 = vmatprep.subr.mxu0 0.0
    %195 = vmatpush1.msra.mxu0 %v86
    %196 = vmatprep.subr.mxu0 0.0
    %197 = vmatpush1.msra.mxu0 0.0
    %198 = vmatprep.subr.mxu0 0.0
    %199 = vmatpush1.msra.mxu0 0.0
    %200 = vmatprep.subr.mxu0 0.0
    %201 = vmatpush1.msra.mxu0 0.0
    %202 = vmatprep.subr.mxu0 0.0
    %203 = vmatpush1.msra.mxu0 0.0
    %204 = vmatprep.subr.mxu0 0.0
    %205 = vmatpush1.msra.mxu0 0.0
    %206 = vmatprep.subr.mxu0 0.0
    %207 = vmatpush1.msra.mxu0 0.0
    %208 = vmatprep.subr.mxu0 0.0
    %209 = vmatpush1.msra.mxu0 0.0
    %210 = vmatprep.subr.mxu0 0.0
    %211 = vmatpush1.msra.mxu0 0.0
    %212 = vmatprep.subr.mxu0 0.0
    %213 = vmatpush1.msra.mxu0 0.0
    %214 = vmatprep.subr.mxu0 0.0
    %215 = vmatpush1.msra.mxu0 0.0
    %216 = vmatprep.subr.mxu0 0.0
    %217 = vmatpush1.msra.mxu0 0.0
    %218 = vmatprep.subr.mxu0 0.0
    %219 = vmatpush1.msra.mxu0 0.0
    %220 = vmatprep.subr.mxu0 0.0
    %221 = vmatpush1.msra.mxu0 0.0
    %222 = vmatprep.subr.mxu0 0.0
    %223 = vmatpush1.msra.mxu0 0.0
    %224 = vmatprep.subr.mxu0 0.0
    %225 = vmatpush1.msra.mxu0 0.0
    %226 = vmatprep.subr.mxu0 0.0
    %227 = vmatpush1.msra.mxu0 0.0
    %228 = vmatprep.mubr.f32.mxu0 0.0
    %229 = vmatmul.mubr.f32.gmra.mrb[0].mxu0 %v37
    %v230 = vpop.f32.mrb[0].mxu0
    %v231 = vadd.f32 0.0, %v230
    %v232 = vpop.f32.mrb[0].mxu0
    %233 = vmatprep.mubr.f32.mxu0 0.0
    %234 = vmatmul.mubr.f32.gmra.mrb[0].mxu0 %v38
    %v235 = vpop.f32.mrb[0].mxu0
    %v236 = vadd.f32 0.0, %v235
    %v237 = vpop.f32.mrb[0].mxu0
    %238 = vdwg.mxu0
    %v239 = vld [vmem:[%s0] sm:$0x7]
    %v240 = vld [vmem:[%s1] sm:$0xff]
    %242 = vset.pattern.permute.xlu0 0
    %243 = vperm.xlu0 %242, %v30
    %v244 = vpop.permute.xlu0 %243
    %v246 = vlaneseq
    %v247 = vshrl.u32 %v246, 7
    %v248 = vsub.s32 0, %v247
    %v249 = vrot.slane %v239, %v248
    %v250 = vmul.f32 %v244, %v249
    %251 = vset.pattern.permute.xlu0 1
    %252 = vperm.xlu0 %251, %v30
    %v253 = vpop.permute.xlu0 %252
    %v255 = vlaneseq
    %v256 = vshrl.u32 %v255, 7
    %v257 = vsub.s32 1, %v256
    %v258 = vrot.slane %v239, %v257
    %v259 = vmul.f32 %v253, %v258
    %v260 = vadd.f32 %v250, %v259
    %261 = vset.pattern.permute.xlu0 2
    %262 = vperm.xlu0 %261, %v30
    %v263 = vpop.permute.xlu0 %262
    %v265 = vlaneseq
    %v266 = vshrl.u32 %v265, 7
    %v267 = vsub.s32 2, %v266
    %v268 = vrot.slane %v239, %v267
    %v269 = vmul.f32 %v263, %v268
    %v270 = vadd.f32 %v260, %v269
    %272 = vset.pattern.permute.xlu0 0
    %273 = vperm.xlu0 %272, %v32
    %v274 = vpop.permute.xlu0 %273
    %v276 = vmul.f32 %v274, %v249
    %277 = vset.pattern.permute.xlu0 1
    %278 = vperm.xlu0 %277, %v32
    %v279 = vpop.permute.xlu0 %278
    %v281 = vmul.f32 %v279, %v258
    %v282 = vadd.f32 %v276, %v281
    %283 = vset.pattern.permute.xlu0 2
    %284 = vperm.xlu0 %283, %v32
    %v285 = vpop.permute.xlu0 %284
    %v287 = vmul.f32 %v285, %v268
    %v288 = vadd.f32 %v282, %v287
    %290 = vset.pattern.permute.xlu0 0
    %291 = vperm.xlu0 %290, %v34
    %v292 = vpop.permute.xlu0 %291
    %v294 = vmul.f32 %v292, %v249
    %295 = vset.pattern.permute.xlu0 1
    %296 = vperm.xlu0 %295, %v34
    %v297 = vpop.permute.xlu0 %296
    %v299 = vmul.f32 %v297, %v258
    %v300 = vadd.f32 %v294, %v299
    %301 = vset.pattern.permute.xlu0 2
    %302 = vperm.xlu0 %301, %v34
    %v303 = vpop.permute.xlu0 %302
    %v305 = vmul.f32 %v303, %v268
    %v306 = vadd.f32 %v300, %v305
    %vm307 = vcmask 64512
    %v309 = vsel %vm307, %v270, 0
    %v312 = vsel %vm307, %v29, 0
    %314 = vmatprep.subr.mxu0 0.0
    %315 = vmatpush1.xpose.msra.mxu0 %v312
    %316 = vmatprep.subr.mxu0 0.0
    %317 = vmatpush1.xpose.msra.mxu0 0.0
    %318 = vmatprep.subr.mxu0 0.0
    %319 = vmatpush1.xpose.msra.mxu0 0.0
    %320 = vmatprep.subr.mxu0 0.0
    %321 = vmatpush1.xpose.msra.mxu0 0.0
    %322 = vmatprep.subr.mxu0 0.0
    %323 = vmatpush1.xpose.msra.mxu0 0.0
    %324 = vmatprep.subr.mxu0 0.0
    %325 = vmatpush1.xpose.msra.mxu0 0.0
    %326 = vmatprep.subr.mxu0 0.0
    %327 = vmatpush1.xpose.msra.mxu0 0.0
    %328 = vmatprep.subr.mxu0 0.0
    %329 = vmatpush1.xpose.msra.mxu0 0.0
    %330 = vmatprep.subr.mxu0 0.0
    %331 = vmatpush1.xpose.msra.mxu0 0.0
    %332 = vmatprep.subr.mxu0 0.0
    %333 = vmatpush1.xpose.msra.mxu0 0.0
    %334 = vmatprep.subr.mxu0 0.0
    %335 = vmatpush1.xpose.msra.mxu0 0.0
    %336 = vmatprep.subr.mxu0 0.0
    %337 = vmatpush1.xpose.msra.mxu0 0.0
    %338 = vmatprep.subr.mxu0 0.0
    %339 = vmatpush1.xpose.msra.mxu0 0.0
    %340 = vmatprep.subr.mxu0 0.0
    %341 = vmatpush1.xpose.msra.mxu0 0.0
    %342 = vmatprep.subr.mxu0 0.0
    %343 = vmatpush1.xpose.msra.mxu0 0.0
    %344 = vmatprep.subr.mxu0 0.0
    %345 = vmatpush1.xpose.msra.mxu0 0.0
    %346 = vmatprep.subr.mxu0 0.0
    %347 = vmatpush1.xpose.msra.mxu0 0.0
    %348 = vmatprep.subr.mxu0 0.0
    %349 = vmatpush1.xpose.msra.mxu0 0.0
    %350 = vmatprep.subr.mxu0 0.0
    %351 = vmatpush1.xpose.msra.mxu0 0.0
    %352 = vmatprep.subr.mxu0 0.0
    %353 = vmatpush1.xpose.msra.mxu0 0.0
    %354 = vmatprep.subr.mxu0 0.0
    %355 = vmatpush1.xpose.msra.mxu0 0.0
    %356 = vmatprep.subr.mxu0 0.0
    %357 = vmatpush1.xpose.msra.mxu0 0.0
    %358 = vmatprep.subr.mxu0 0.0
    %359 = vmatpush1.xpose.msra.mxu0 0.0
    %360 = vmatprep.subr.mxu0 0.0
    %361 = vmatpush1.xpose.msra.mxu0 0.0
    %362 = vmatprep.subr.mxu0 0.0
    %363 = vmatpush1.xpose.msra.mxu0 0.0
    %364 = vmatprep.subr.mxu0 0.0
    %365 = vmatpush1.xpose.msra.mxu0 0.0
    %366 = vmatprep.subr.mxu0 0.0
    %367 = vmatpush1.xpose.msra.mxu0 0.0
    %368 = vmatprep.subr.mxu0 0.0
    %369 = vmatpush1.xpose.msra.mxu0 0.0
    %370 = vmatprep.subr.mxu0 0.0
    %371 = vmatpush1.xpose.msra.mxu0 0.0
    %372 = vmatprep.subr.mxu0 0.0
    %373 = vmatpush1.xpose.msra.mxu0 0.0
    %374 = vmatprep.subr.mxu0 0.0
    %375 = vmatpush1.xpose.msra.mxu0 0.0
    %376 = vmatprep.subr.mxu0 0.0
    %377 = vmatpush1.xpose.msra.mxu0 0.0
    %378 = vmatprep.mubr.f32.mxu0 0.0
    %379 = vmatmul.mubr.f32.gmra.mrb[0].mxu0 %v309
    %v380 = vpop.f32.mrb[0].mxu0
    %v381 = vadd.f32 0.0, %v380
    %v382 = vpop.f32.mrb[0].mxu0
    %383 = vdwg.mxu0
    %v384 = vmul.f32 %v288, %v381
    %385 = vmatprep.subr.mxu0 0.0
    %386 = vmatpush1.xpose.msra.mxu0 %v156
    %387 = vmatprep.subr.mxu0 0.0
    %388 = vmatpush1.xpose.msra.mxu0 0.0
    %389 = vmatprep.subr.mxu0 0.0
    %390 = vmatpush1.xpose.msra.mxu0 0.0
    %391 = vmatprep.subr.mxu0 0.0
    %392 = vmatpush1.xpose.msra.mxu0 0.0
    %393 = vmatprep.subr.mxu0 0.0
    %394 = vmatpush1.xpose.msra.mxu0 0.0
    %395 = vmatprep.subr.mxu0 0.0
    %396 = vmatpush1.xpose.msra.mxu0 0.0
    %397 = vmatprep.subr.mxu0 0.0
    %398 = vmatpush1.xpose.msra.mxu0 0.0
    %399 = vmatprep.subr.mxu0 0.0
    %400 = vmatpush1.xpose.msra.mxu0 0.0
    %401 = vmatprep.subr.mxu0 0.0
    %402 = vmatpush1.xpose.msra.mxu0 0.0
    %403 = vmatprep.subr.mxu0 0.0
    %404 = vmatpush1.xpose.msra.mxu0 0.0
    %405 = vmatprep.subr.mxu0 0.0
    %406 = vmatpush1.xpose.msra.mxu0 0.0
    %407 = vmatprep.subr.mxu0 0.0
    %408 = vmatpush1.xpose.msra.mxu0 0.0
    %409 = vmatprep.subr.mxu0 0.0
    %410 = vmatpush1.xpose.msra.mxu0 0.0
    %411 = vmatprep.subr.mxu0 0.0
    %412 = vmatpush1.xpose.msra.mxu0 0.0
    %413 = vmatprep.subr.mxu0 0.0
    %414 = vmatpush1.xpose.msra.mxu0 0.0
    %415 = vmatprep.subr.mxu0 0.0
    %416 = vmatpush1.xpose.msra.mxu0 0.0
    %417 = vmatprep.subr.mxu0 0.0
    %418 = vmatpush1.xpose.msra.mxu0 0.0
    %419 = vmatprep.subr.mxu0 0.0
    %420 = vmatpush1.xpose.msra.mxu0 0.0
    %421 = vmatprep.subr.mxu0 0.0
    %422 = vmatpush1.xpose.msra.mxu0 0.0
    %423 = vmatprep.subr.mxu0 0.0
    %424 = vmatpush1.xpose.msra.mxu0 0.0
    %425 = vmatprep.subr.mxu0 0.0
    %426 = vmatpush1.xpose.msra.mxu0 0.0
    %427 = vmatprep.subr.mxu0 0.0
    %428 = vmatpush1.xpose.msra.mxu0 0.0
    %429 = vmatprep.subr.mxu0 0.0
    %430 = vmatpush1.xpose.msra.mxu0 0.0
    %431 = vmatprep.subr.mxu0 0.0
    %432 = vmatpush1.xpose.msra.mxu0 0.0
    %433 = vmatprep.subr.mxu0 0.0
    %434 = vmatpush1.xpose.msra.mxu0 0.0
    %435 = vmatprep.subr.mxu0 0.0
    %436 = vmatpush1.xpose.msra.mxu0 0.0
    %437 = vmatprep.subr.mxu0 0.0
    %438 = vmatpush1.xpose.msra.mxu0 0.0
    %439 = vmatprep.subr.mxu0 0.0
    %440 = vmatpush1.xpose.msra.mxu0 0.0
    %441 = vmatprep.subr.mxu0 0.0
    %442 = vmatpush1.xpose.msra.mxu0 0.0
    %443 = vmatprep.subr.mxu0 0.0
    %444 = vmatpush1.xpose.msra.mxu0 0.0
    %445 = vmatprep.subr.mxu0 0.0
    %446 = vmatpush1.xpose.msra.mxu0 0.0
    %447 = vmatprep.subr.mxu0 0.0
    %448 = vmatpush1.xpose.msra.mxu0 0.0
    %449 = vmatprep.mubr.f32.mxu0 0.0
    %450 = vmatmul.mubr.f32.gmra.mrb[0].mxu0 %v154
    %v451 = vpop.f32.mrb[0].mxu0
    %v452 = vadd.f32 0.0, %v451
    %v453 = vpop.f32.mrb[0].mxu0
    %454 = vdwg.mxu0
    %v455 = vmul.f32 %v452, 0.17677669
    %v456 = vsel %vm307, %v455, -inf
    %457 = vmax.xlane.f32.xlu0 %v456
    %v458 = vpop.xlane.xlu0 %457
    %v459 = vsub.f32 %v455, %v458
    %v460 = vmul.f32 %v459, 1.442695
    %v461 = vpow.pop %v460
    %v462 = vsel %vm307, %v461, 0.0
    %463 = vadd.xlane.f32.xlu0 %v462
    %v464 = vpop.xlane.xlu0 %463
    %v466 = vsel %vm307, %v461, 0
    %468 = vmatprep.subr.mxu0 0.0
    %469 = vmatpush1.msra.mxu0 %v156
    %470 = vmatprep.subr.mxu0 0.0
    %471 = vmatpush1.msra.mxu0 0.0
    %472 = vmatprep.subr.mxu0 0.0
    %473 = vmatpush1.msra.mxu0 0.0
    %474 = vmatprep.subr.mxu0 0.0
    %475 = vmatpush1.msra.mxu0 0.0
    %476 = vmatprep.subr.mxu0 0.0
    %477 = vmatpush1.msra.mxu0 0.0
    %478 = vmatprep.subr.mxu0 0.0
    %479 = vmatpush1.msra.mxu0 0.0
    %480 = vmatprep.subr.mxu0 0.0
    %481 = vmatpush1.msra.mxu0 0.0
    %482 = vmatprep.subr.mxu0 0.0
    %483 = vmatpush1.msra.mxu0 0.0
    %484 = vmatprep.subr.mxu0 0.0
    %485 = vmatpush1.msra.mxu0 0.0
    %486 = vmatprep.subr.mxu0 0.0
    %487 = vmatpush1.msra.mxu0 0.0
    %488 = vmatprep.subr.mxu0 0.0
    %489 = vmatpush1.msra.mxu0 0.0
    %490 = vmatprep.subr.mxu0 0.0
    %491 = vmatpush1.msra.mxu0 0.0
    %492 = vmatprep.subr.mxu0 0.0
    %493 = vmatpush1.msra.mxu0 0.0
    %494 = vmatprep.subr.mxu0 0.0
    %495 = vmatpush1.msra.mxu0 0.0
    %496 = vmatprep.subr.mxu0 0.0
    %497 = vmatpush1.msra.mxu0 0.0
    %498 = vmatprep.subr.mxu0 0.0
    %499 = vmatpush1.msra.mxu0 0.0
    %500 = vmatprep.subr.mxu0 0.0
    %501 = vmatpush1.msra.mxu0 0.0
    %502 = vmatprep.subr.mxu0 0.0
    %503 = vmatpush1.msra.mxu0 0.0
    %504 = vmatprep.subr.mxu0 0.0
    %505 = vmatpush1.msra.mxu0 0.0
    %506 = vmatprep.subr.mxu0 0.0
    %507 = vmatpush1.msra.mxu0 0.0
    %508 = vmatprep.subr.mxu0 0.0
    %509 = vmatpush1.msra.mxu0 0.0
    %510 = vmatprep.subr.mxu0 0.0
    %511 = vmatpush1.msra.mxu0 0.0
    %512 = vmatprep.subr.mxu0 0.0
    %513 = vmatpush1.msra.mxu0 0.0
    %514 = vmatprep.subr.mxu0 0.0
    %515 = vmatpush1.msra.mxu0 0.0
    %516 = vmatprep.subr.mxu0 0.0
    %517 = vmatpush1.msra.mxu0 0.0
    %518 = vmatprep.subr.mxu0 0.0
    %519 = vmatpush1.msra.mxu0 0.0
    %520 = vmatprep.subr.mxu0 0.0
    %521 = vmatpush1.msra.mxu0 0.0
    %522 = vmatprep.subr.mxu0 0.0
    %523 = vmatpush1.msra.mxu0 0.0
    %524 = vmatprep.subr.mxu0 0.0
    %525 = vmatpush1.msra.mxu0 0.0
    %526 = vmatprep.subr.mxu0 0.0
    %527 = vmatpush1.msra.mxu0 0.0
    %528 = vmatprep.subr.mxu0 0.0
    %529 = vmatpush1.msra.mxu0 0.0
    %530 = vmatprep.subr.mxu0 0.0
    %531 = vmatpush1.msra.mxu0 0.0
    %532 = vmatprep.mubr.f32.mxu0 0.0
    %533 = vmatmul.mubr.f32.gmra.mrb[0].mxu0 %v466
    %v534 = vpop.f32.mrb[0].mxu0
    %v535 = vadd.f32 0.0, %v534
    %v536 = vpop.f32.mrb[0].mxu0
    %537 = vdwg.mxu0
    %v538 = vrcp.pop %v464
    %v539 = vmul.f32 1.0, %v538
    %v540 = vmul.f32 %v535, %v539
    %541 = vmatprep.subr.mxu0 0.0
    %542 = vmatpush1.xpose.msra.mxu0 %v540
    %543 = vmatprep.subr.mxu0 0.0
    %544 = vmatpush1.xpose.msra.mxu0 0.0
    %545 = vmatprep.subr.mxu0 0.0
    %546 = vmatpush1.xpose.msra.mxu0 0.0
    %547 = vmatprep.subr.mxu0 0.0
    %548 = vmatpush1.xpose.msra.mxu0 0.0
    %549 = vmatprep.subr.mxu0 0.0
    %550 = vmatpush1.xpose.msra.mxu0 0.0
    %551 = vmatprep.subr.mxu0 0.0
    %552 = vmatpush1.xpose.msra.mxu0 0.0
    %553 = vmatprep.subr.mxu0 0.0
    %554 = vmatpush1.xpose.msra.mxu0 0.0
    %555 = vmatprep.subr.mxu0 0.0
    %556 = vmatpush1.xpose.msra.mxu0 0.0
    %557 = vmatprep.subr.mxu0 0.0
    %558 = vmatpush1.xpose.msra.mxu0 0.0
    %559 = vmatprep.subr.mxu0 0.0
    %560 = vmatpush1.xpose.msra.mxu0 0.0
    %561 = vmatprep.subr.mxu0 0.0
    %562 = vmatpush1.xpose.msra.mxu0 0.0
    %563 = vmatprep.subr.mxu0 0.0
    %564 = vmatpush1.xpose.msra.mxu0 0.0
    %565 = vmatprep.subr.mxu0 0.0
    %566 = vmatpush1.xpose.msra.mxu0 0.0
    %567 = vmatprep.subr.mxu0 0.0
    %568 = vmatpush1.xpose.msra.mxu0 0.0
    %569 = vmatprep.subr.mxu0 0.0
    %570 = vmatpush1.xpose.msra.mxu0 0.0
    %571 = vmatprep.subr.mxu0 0.0
    %572 = vmatpush1.xpose.msra.mxu0 0.0
    %573 = vmatprep.subr.mxu0 0.0
    %574 = vmatpush1.xpose.msra.mxu0 0.0
    %575 = vmatprep.subr.mxu0 0.0
    %576 = vmatpush1.xpose.msra.mxu0 0.0
    %577 = vmatprep.subr.mxu0 0.0
    %578 = vmatpush1.xpose.msra.mxu0 0.0
    %579 = vmatprep.subr.mxu0 0.0
    %580 = vmatpush1.xpose.msra.mxu0 0.0
    %581 = vmatprep.subr.mxu0 0.0
    %582 = vmatpush1.xpose.msra.mxu0 0.0
    %583 = vmatprep.subr.mxu0 0.0
    %584 = vmatpush1.xpose.msra.mxu0 0.0
    %585 = vmatprep.subr.mxu0 0.0
    %586 = vmatpush1.xpose.msra.mxu0 0.0
    %587 = vmatprep.subr.mxu0 0.0
    %588 = vmatpush1.xpose.msra.mxu0 0.0
    %589 = vmatprep.subr.mxu0 0.0
    %590 = vmatpush1.xpose.msra.mxu0 0.0
    %591 = vmatprep.subr.mxu0 0.0
    %592 = vmatpush1.xpose.msra.mxu0 0.0
    %593 = vmatprep.subr.mxu0 0.0
    %594 = vmatpush1.xpose.msra.mxu0 0.0
    %595 = vmatprep.subr.mxu0 0.0
    %596 = vmatpush1.xpose.msra.mxu0 0.0
    %597 = vmatprep.subr.mxu0 0.0
    %598 = vmatpush1.xpose.msra.mxu0 0.0
    %599 = vmatprep.subr.mxu0 0.0
    %600 = vmatpush1.xpose.msra.mxu0 0.0
    %601 = vmatprep.subr.mxu0 0.0
    %602 = vmatpush1.xpose.msra.mxu0 0.0
    %603 = vmatprep.subr.mxu0 0.0
    %604 = vmatpush1.xpose.msra.mxu0 0.0
    %605 = vmatprep.mubr.f32.mxu0 0.0
    %606 = vmatmul.mubr.f32.gmra.mrb[0].mxu0 %v35
    %v607 = vpop.f32.mrb[0].mxu0
    %v608 = vadd.f32 0.0, %v607
    %v609 = vpop.f32.mrb[0].mxu0
    %610 = vdwg.mxu0
    %611 = vxpose.xlu0.b32.start [1/16] %v384, 128
    %612 = vxpose.xlu0.b32.cont [2/16] 0.0, 128
    %613 = vxpose.xlu0.b32.cont [3/16] 0.0, 128
    %614 = vxpose.xlu0.b32.cont [4/16] 0.0, 128
    %615 = vxpose.xlu0.b32.cont [5/16] 0.0, 128
    %616 = vxpose.xlu0.b32.cont [6/16] 0.0, 128
    %617 = vxpose.xlu0.b32.cont [7/16] 0.0, 128
    %618 = vxpose.xlu0.b32.cont [8/16] 0.0, 128
    %619 = vxpose.xlu0.b32.cont [9/16] 0.0, 128
    %620 = vxpose.xlu0.b32.cont [10/16] 0.0, 128
    %621 = vxpose.xlu0.b32.cont [11/16] 0.0, 128
    %622 = vxpose.xlu0.b32.cont [12/16] 0.0, 128
    %623 = vxpose.xlu0.b32.cont [13/16] 0.0, 128
    %624 = vxpose.xlu0.b32.cont [14/16] 0.0, 128
    %625 = vxpose.xlu0.b32.cont [15/16] 0.0, 128
    %626 = vxpose.xlu0.b32.end [16/16] 0.0, 128
    %v627 = vpop.trf.xlu0
    %v628 = vpop.trf.xlu0
    %v629 = vpop.trf.xlu0
    %v630 = vpop.trf.xlu0
    %v631 = vpop.trf.xlu0
    %v632 = vpop.trf.xlu0
    %v633 = vpop.trf.xlu0
    %v634 = vpop.trf.xlu0
    %v635 = vpop.trf.xlu0
    %v636 = vpop.trf.xlu0
    %v637 = vpop.trf.xlu0
    %v638 = vpop.trf.xlu0
    %v639 = vpop.trf.xlu0
    %v640 = vpop.trf.xlu0
    %v641 = vpop.trf.xlu0
    %v642 = vpop.trf.xlu0
    %vm643 = vcmask 23552
    %v645 = vsel %vm643, %v627, 0
    %vm647 = vcmask 1042432
    %v649 = vsel %vm647, %v36, 0
    %651 = vmatprep.subr.mxu0 0.0
    %652 = vmatpush1.msra.mxu0 %v649
    %653 = vmatprep.subr.mxu0 0.0
    %654 = vmatpush1.msra.mxu0 0.0
    %655 = vmatprep.subr.mxu0 0.0
    %656 = vmatpush1.msra.mxu0 0.0
    %657 = vmatprep.subr.mxu0 0.0
    %658 = vmatpush1.msra.mxu0 0.0
    %659 = vmatprep.subr.mxu0 0.0
    %660 = vmatpush1.msra.mxu0 0.0
    %661 = vmatprep.subr.mxu0 0.0
    %662 = vmatpush1.msra.mxu0 0.0
    %663 = vmatprep.subr.mxu0 0.0
    %664 = vmatpush1.msra.mxu0 0.0
    %665 = vmatprep.subr.mxu0 0.0
    %666 = vmatpush1.msra.mxu0 0.0
    %667 = vmatprep.subr.mxu0 0.0
    %668 = vmatpush1.msra.mxu0 0.0
    %669 = vmatprep.subr.mxu0 0.0
    %670 = vmatpush1.msra.mxu0 0.0
    %671 = vmatprep.subr.mxu0 0.0
    %672 = vmatpush1.msra.mxu0 0.0
    %673 = vmatprep.subr.mxu0 0.0
    %674 = vmatpush1.msra.mxu0 0.0
    %675 = vmatprep.subr.mxu0 0.0
    %676 = vmatpush1.msra.mxu0 0.0
    %677 = vmatprep.subr.mxu0 0.0
    %678 = vmatpush1.msra.mxu0 0.0
    %679 = vmatprep.subr.mxu0 0.0
    %680 = vmatpush1.msra.mxu0 0.0
    %681 = vmatprep.subr.mxu0 0.0
    %682 = vmatpush1.msra.mxu0 0.0
    %683 = vmatprep.subr.mxu0 0.0
    %684 = vmatpush1.msra.mxu0 0.0
    %685 = vmatprep.subr.mxu0 0.0
    %686 = vmatpush1.msra.mxu0 0.0
    %687 = vmatprep.subr.mxu0 0.0
    %688 = vmatpush1.msra.mxu0 0.0
    %689 = vmatprep.subr.mxu0 0.0
    %690 = vmatpush1.msra.mxu0 0.0
    %691 = vmatprep.subr.mxu0 0.0
    %692 = vmatpush1.msra.mxu0 0.0
    %693 = vmatprep.subr.mxu0 0.0
    %694 = vmatpush1.msra.mxu0 0.0
    %695 = vmatprep.subr.mxu0 0.0
    %696 = vmatpush1.msra.mxu0 0.0
    %697 = vmatprep.subr.mxu0 0.0
    %698 = vmatpush1.msra.mxu0 0.0
    %699 = vmatprep.subr.mxu0 0.0
    %700 = vmatpush1.msra.mxu0 0.0
    %701 = vmatprep.subr.mxu0 0.0
    %702 = vmatpush1.msra.mxu0 0.0
    %703 = vmatprep.subr.mxu0 0.0
    %704 = vmatpush1.msra.mxu0 0.0
    %705 = vmatprep.subr.mxu0 0.0
    %706 = vmatpush1.msra.mxu0 0.0
    %707 = vmatprep.subr.mxu0 0.0
    %708 = vmatpush1.msra.mxu0 0.0
    %709 = vmatprep.subr.mxu0 0.0
    %710 = vmatpush1.msra.mxu0 0.0
    %711 = vmatprep.subr.mxu0 0.0
    %712 = vmatpush1.msra.mxu0 0.0
    %713 = vmatprep.subr.mxu0 0.0
    %714 = vmatpush1.msra.mxu0 0.0
    %715 = vmatprep.mubr.f32.mxu0 0.0
    %716 = vmatmul.mubr.f32.gmra.mrb[0].mxu0 %v645
    %v717 = vpop.f32.mrb[0].mxu0
    %v718 = vadd.f32 0.0, %v717
    %v719 = vpop.f32.mrb[0].mxu0
    %720 = vdwg.mxu0
    %v721 = vxor.u32 %v608, 2147483648
    %v722 = vmul.f32 %v721, 1.442695
    %v723 = vpow.pop %v722
    %v724 = vadd.f32 %v723, 1.0
    %v725 = vrcp.pop %v724
    %v726 = vmul.f32 1.0, %v725
    %v727 = vmul.f32 %v726, %v384
    %v728 = vxor.u32 %v718, 2147483648
    %v729 = vmul.f32 %v728, 1.442695
    %v730 = vpow.pop %v729
    %v731 = vadd.f32 %v730, 1.0
    %v732 = vrcp.pop %v731
    %v733 = vmul.f32 1.0, %v732
    %v734 = vmul.f32 %v733, %v540
    %v736 = vrot.slane %v306, 1
    %v738 = vmul.f32 %v727, %v736
    %v739 = vrot.slane %v306, 7
    %v741 = vmul.f32 %v727, %v739
    %v743 = vrot.slane %v741, 1
    %v745 = vsub.f32 %v738, %v743
    %v746 = vrot.slane %v306, 6
    %v748 = vmul.f32 %v727, %v746
    %v749 = vrot.slane %v306, 2
    %v751 = vmul.f32 %v727, %v749
    %v753 = vrot.slane %v751, 6
    %v755 = vsub.f32 %v748, %v753
    %v757 = vrot.slane %v745, 1
    %v760 = vrot.slane %v755, 1
    %v762 = vrot.slane %v745, 6
    %vm764 = vcmask 1040384
    %v765 = vsel %vm764, %v757, %v760
    %vm766 = vcmask 1041408
    %v767 = vsel %vm766, %v765, %v762
    %v768 = vadd.f32 %v239, %v767
    %v769 = vxor.u32 %v768, 2147483648
    %v770 = vmul.f32 %v769, 1.442695
    %v771 = vpow.pop %v770
    %v772 = vadd.f32 %v771, 1.0
    %v773 = vrcp.pop %v772
    %v774 = vmul.f32 1.0, %v773
    %v775 = vmul.f32 %v768, %v774
    %vm776 = vcmask 59392
    %777 = vst.msk [vmem:[%s7] sm:$0x7] %vm776, %v775
    %v778 = vmul.f32 %v734, %v231
    %779 = vadd.xlane.f32.xlu0 %v778
    %v780 = vpop.xlane.xlu0 %779
    %v781 = vadd.f32 %v240, %v780
    %v782 = vxor.u32 %v781, 2147483648
    %v783 = vmul.f32 %v782, 1.442695
    %v784 = vpow.pop %v783
    %v785 = vadd.f32 %v784, 1.0
    %v786 = vrcp.pop %v785
    %v787 = vmul.f32 1.0, %v786
    %v788 = vmul.f32 %v781, %v787
    %789 = vst [vmem:[#allocation2] sm:$0xff] %v788
    %s790 = scalar_lea.vmem %s0, 4
    %v791 = vld [vmem:[%s790] sm:$0x7]
    %s792 = scalar_lea.vmem %s1, 8
    %v793 = vld [vmem:[%s792] sm:$0xff]
    %v794 = vlaneseq
    %v795 = vshrl.u32 %v794, 7
    %v796 = vsub.s32 0, %v795
    %v797 = vrot.slane %v791, %v796
    %v798 = vmul.f32 %v244, %v797
    %v799 = vlaneseq
    %v800 = vshrl.u32 %v799, 7
    %v801 = vsub.s32 1, %v800
    %v802 = vrot.slane %v791, %v801
    %v803 = vmul.f32 %v253, %v802
    %v804 = vadd.f32 %v798, %v803
    %v805 = vlaneseq
    %v806 = vshrl.u32 %v805, 7
    %v807 = vsub.s32 2, %v806
    %v808 = vrot.slane %v791, %v807
    %v809 = vmul.f32 %v263, %v808
    %v810 = vadd.f32 %v804, %v809
    %v811 = vmul.f32 %v274, %v797
    %v812 = vmul.f32 %v279, %v802
    %v813 = vadd.f32 %v811, %v812
    %v814 = vmul.f32 %v285, %v808
    %v815 = vadd.f32 %v813, %v814
    %v816 = vmul.f32 %v292, %v797
    %v817 = vmul.f32 %v297, %v802
    %v818 = vadd.f32 %v816, %v817
    %v819 = vmul.f32 %v303, %v808
    %v820 = vadd.f32 %v818, %v819
    %v822 = vsel %vm307, %v810, 0
    %824 = vmatprep.subr.mxu0 0.0
    %825 = vmatpush1.xpose.msra.mxu0 %v312
    %826 = vmatprep.subr.mxu0 0.0
    %827 = vmatpush1.xpose.msra.mxu0 0.0
    %828 = vmatprep.subr.mxu0 0.0
    %829 = vmatpush1.xpose.msra.mxu0 0.0
    %830 = vmatprep.subr.mxu0 0.0
    %831 = vmatpush1.xpose.msra.mxu0 0.0
    %832 = vmatprep.subr.mxu0 0.0
    %833 = vmatpush1.xpose.msra.mxu0 0.0
    %834 = vmatprep.subr.mxu0 0.0
    %835 = vmatpush1.xpose.msra.mxu0 0.0
    %836 = vmatprep.subr.mxu0 0.0
    %837 = vmatpush1.xpose.msra.mxu0 0.0
    %838 = vmatprep.subr.mxu0 0.0
    %839 = vmatpush1.xpose.msra.mxu0 0.0
    %840 = vmatprep.subr.mxu0 0.0
    %841 = vmatpush1.xpose.msra.mxu0 0.0
    %842 = vmatprep.subr.mxu0 0.0
    %843 = vmatpush1.xpose.msra.mxu0 0.0
    %844 = vmatprep.subr.mxu0 0.0
    %845 = vmatpush1.xpose.msra.mxu0 0.0
    %846 = vmatprep.subr.mxu0 0.0
    %847 = vmatpush1.xpose.msra.mxu0 0.0
    %848 = vmatprep.subr.mxu0 0.0
    %849 = vmatpush1.xpose.msra.mxu0 0.0
    %850 = vmatprep.subr.mxu0 0.0
    %851 = vmatpush1.xpose.msra.mxu0 0.0
    %852 = vmatprep.subr.mxu0 0.0
    %853 = vmatpush1.xpose.msra.mxu0 0.0
    %854 = vmatprep.subr.mxu0 0.0
    %855 = vmatpush1.xpose.msra.mxu0 0.0
    %856 = vmatprep.subr.mxu0 0.0
    %857 = vmatpush1.xpose.msra.mxu0 0.0
    %858 = vmatprep.subr.mxu0 0.0
    %859 = vmatpush1.xpose.msra.mxu0 0.0
    %860 = vmatprep.subr.mxu0 0.0
    %861 = vmatpush1.xpose.msra.mxu0 0.0
    %862 = vmatprep.subr.mxu0 0.0
    %863 = vmatpush1.xpose.msra.mxu0 0.0
    %864 = vmatprep.subr.mxu0 0.0
    %865 = vmatpush1.xpose.msra.mxu0 0.0
    %866 = vmatprep.subr.mxu0 0.0
    %867 = vmatpush1.xpose.msra.mxu0 0.0
    %868 = vmatprep.subr.mxu0 0.0
    %869 = vmatpush1.xpose.msra.mxu0 0.0
    %870 = vmatprep.subr.mxu0 0.0
    %871 = vmatpush1.xpose.msra.mxu0 0.0
    %872 = vmatprep.subr.mxu0 0.0
    %873 = vmatpush1.xpose.msra.mxu0 0.0
    %874 = vmatprep.subr.mxu0 0.0
    %875 = vmatpush1.xpose.msra.mxu0 0.0
    %876 = vmatprep.subr.mxu0 0.0
    %877 = vmatpush1.xpose.msra.mxu0 0.0
    %878 = vmatprep.subr.mxu0 0.0
    %879 = vmatpush1.xpose.msra.mxu0 0.0
    %880 = vmatprep.subr.mxu0 0.0
    %881 = vmatpush1.xpose.msra.mxu0 0.0
    %882 = vmatprep.subr.mxu0 0.0
    %883 = vmatpush1.xpose.msra.mxu0 0.0
    %884 = vmatprep.subr.mxu0 0.0
    %885 = vmatpush1.xpose.msra.mxu0 0.0
    %886 = vmatprep.subr.mxu0 0.0
    %887 = vmatpush1.xpose.msra.mxu0 0.0
    %888 = vmatprep.mubr.f32.mxu0 0.0
    %889 = vmatmul.mubr.f32.gmra.mrb[0].mxu0 %v822
    %v890 = vpop.f32.mrb[0].mxu0
    %v891 = vadd.f32 0.0, %v890
    %v892 = vpop.f32.mrb[0].mxu0
    %893 = vdwg.mxu0
    %v894 = vmul.f32 %v815, %v891
    %895 = vmatprep.subr.mxu0 0.0
    %896 = vmatpush1.xpose.msra.mxu0 %v162
    %897 = vmatprep.subr.mxu0 0.0
    %898 = vmatpush1.xpose.msra.mxu0 0.0
    %899 = vmatprep.subr.mxu0 0.0
    %900 = vmatpush1.xpose.msra.mxu0 0.0
    %901 = vmatprep.subr.mxu0 0.0
    %902 = vmatpush1.xpose.msra.mxu0 0.0
    %903 = vmatprep.subr.mxu0 0.0
    %904 = vmatpush1.xpose.msra.mxu0 0.0
    %905 = vmatprep.subr.mxu0 0.0
    %906 = vmatpush1.xpose.msra.mxu0 0.0
    %907 = vmatprep.subr.mxu0 0.0
    %908 = vmatpush1.xpose.msra.mxu0 0.0
    %909 = vmatprep.subr.mxu0 0.0
    %910 = vmatpush1.xpose.msra.mxu0 0.0
    %911 = vmatprep.subr.mxu0 0.0
    %912 = vmatpush1.xpose.msra.mxu0 0.0
    %913 = vmatprep.subr.mxu0 0.0
    %914 = vmatpush1.xpose.msra.mxu0 0.0
    %915 = vmatprep.subr.mxu0 0.0
    %916 = vmatpush1.xpose.msra.mxu0 0.0
    %917 = vmatprep.subr.mxu0 0.0
    %918 = vmatpush1.xpose.msra.mxu0 0.0
    %919 = vmatprep.subr.mxu0 0.0
    %920 = vmatpush1.xpose.msra.mxu0 0.0
    %921 = vmatprep.subr.mxu0 0.0
    %922 = vmatpush1.xpose.msra.mxu0 0.0
    %923 = vmatprep.subr.mxu0 0.0
    %924 = vmatpush1.xpose.msra.mxu0 0.0
    %925 = vmatprep.subr.mxu0 0.0
    %926 = vmatpush1.xpose.msra.mxu0 0.0
    %927 = vmatprep.subr.mxu0 0.0
    %928 = vmatpush1.xpose.msra.mxu0 0.0
    %929 = vmatprep.subr.mxu0 0.0
    %930 = vmatpush1.xpose.msra.mxu0 0.0
    %931 = vmatprep.subr.mxu0 0.0
    %932 = vmatpush1.xpose.msra.mxu0 0.0
    %933 = vmatprep.subr.mxu0 0.0
    %934 = vmatpush1.xpose.msra.mxu0 0.0
    %935 = vmatprep.subr.mxu0 0.0
    %936 = vmatpush1.xpose.msra.mxu0 0.0
    %937 = vmatprep.subr.mxu0 0.0
    %938 = vmatpush1.xpose.msra.mxu0 0.0
    %939 = vmatprep.subr.mxu0 0.0
    %940 = vmatpush1.xpose.msra.mxu0 0.0
    %941 = vmatprep.subr.mxu0 0.0
    %942 = vmatpush1.xpose.msra.mxu0 0.0
    %943 = vmatprep.subr.mxu0 0.0
    %944 = vmatpush1.xpose.msra.mxu0 0.0
    %945 = vmatprep.subr.mxu0 0.0
    %946 = vmatpush1.xpose.msra.mxu0 0.0
    %947 = vmatprep.subr.mxu0 0.0
    %948 = vmatpush1.xpose.msra.mxu0 0.0
    %949 = vmatprep.subr.mxu0 0.0
    %950 = vmatpush1.xpose.msra.mxu0 0.0
    %951 = vmatprep.subr.mxu0 0.0
    %952 = vmatpush1.xpose.msra.mxu0 0.0
    %953 = vmatprep.subr.mxu0 0.0
    %954 = vmatpush1.xpose.msra.mxu0 0.0
    %955 = vmatprep.subr.mxu0 0.0
    %956 = vmatpush1.xpose.msra.mxu0 0.0
    %957 = vmatprep.subr.mxu0 0.0
    %958 = vmatpush1.xpose.msra.mxu0 0.0
    %959 = vmatprep.mubr.f32.mxu0 0.0
    %960 = vmatmul.mubr.f32.gmra.mrb[0].mxu0 %v160
    %v961 = vpop.f32.mrb[0].mxu0
    %v962 = vadd.f32 0.0, %v961
    %v963 = vpop.f32.mrb[0].mxu0
    %964 = vdwg.mxu0
    %v965 = vmul.f32 %v962, 0.17677669
    %v966 = vsel %vm307, %v965, -inf
    %967 = vmax.xlane.f32.xlu0 %v966
    %v968 = vpop.xlane.xlu0 %967
    %v969 = vsub.f32 %v965, %v968
    %v970 = vmul.f32 %v969, 1.442695
    %v971 = vpow.pop %v970
    %v972 = vsel %vm307, %v971, 0.0
    %973 = vadd.xlane.f32.xlu0 %v972
    %v974 = vpop.xlane.xlu0 %973
    %v976 = vsel %vm307, %v971, 0
    %978 = vmatprep.subr.mxu0 0.0
    %979 = vmatpush1.msra.mxu0 %v162
    %980 = vmatprep.subr.mxu0 0.0
    %981 = vmatpush1.msra.mxu0 0.0
    %982 = vmatprep.subr.mxu0 0.0
    %983 = vmatpush1.msra.mxu0 0.0
    %984 = vmatprep.subr.mxu0 0.0
    %985 = vmatpush1.msra.mxu0 0.0
    %986 = vmatprep.subr.mxu0 0.0
    %987 = vmatpush1.msra.mxu0 0.0
    %988 = vmatprep.subr.mxu0 0.0
    %989 = vmatpush1.msra.mxu0 0.0
    %990 = vmatprep.subr.mxu0 0.0
    %991 = vmatpush1.msra.mxu0 0.0
    %992 = vmatprep.subr.mxu0 0.0
    %993 = vmatpush1.msra.mxu0 0.0
    %994 = vmatprep.subr.mxu0 0.0
    %995 = vmatpush1.msra.mxu0 0.0
    %996 = vmatprep.subr.mxu0 0.0
    %997 = vmatpush1.msra.mxu0 0.0
    %998 = vmatprep.subr.mxu0 0.0
    %999 = vmatpush1.msra.mxu0 0.0
    %1000 = vmatprep.subr.mxu0 0.0
    %1001 = vmatpush1.msra.mxu0 0.0
    %1002 = vmatprep.subr.mxu0 0.0
    %1003 = vmatpush1.msra.mxu0 0.0
    %1004 = vmatprep.subr.mxu0 0.0
    %1005 = vmatpush1.msra.mxu0 0.0
    %1006 = vmatprep.subr.mxu0 0.0
    %1007 = vmatpush1.msra.mxu0 0.0
    %1008 = vmatprep.subr.mxu0 0.0
    %1009 = vmatpush1.msra.mxu0 0.0
    %1010 = vmatprep.subr.mxu0 0.0
    %1011 = vmatpush1.msra.mxu0 0.0
    %1012 = vmatprep.subr.mxu0 0.0
    %1013 = vmatpush1.msra.mxu0 0.0
    %1014 = vmatprep.subr.mxu0 0.0
    %1015 = vmatpush1.msra.mxu0 0.0
    %1016 = vmatprep.subr.mxu0 0.0
    %1017 = vmatpush1.msra.mxu0 0.0
    %1018 = vmatprep.subr.mxu0 0.0
    %1019 = vmatpush1.msra.mxu0 0.0
    %1020 = vmatprep.subr.mxu0 0.0
    %1021 = vmatpush1.msra.mxu0 0.0
    %1022 = vmatprep.subr.mxu0 0.0
    %1023 = vmatpush1.msra.mxu0 0.0
    %1024 = vmatprep.subr.mxu0 0.0
    %1025 = vmatpush1.msra.mxu0 0.0
    %1026 = vmatprep.subr.mxu0 0.0
    %1027 = vmatpush1.msra.mxu0 0.0
    %1028 = vmatprep.subr.mxu0 0.0
    %1029 = vmatpush1.msra.mxu0 0.0
    %1030 = vmatprep.subr.mxu0 0.0
    %1031 = vmatpush1.msra.mxu0 0.0
    %1032 = vmatprep.subr.mxu0 0.0
    %1033 = vmatpush1.msra.mxu0 0.0
    %1034 = vmatprep.subr.mxu0 0.0
    %1035 = vmatpush1.msra.mxu0 0.0
    %1036 = vmatprep.subr.mxu0 0.0
    %1037 = vmatpush1.msra.mxu0 0.0
    %1038 = vmatprep.subr.mxu0 0.0
    %1039 = vmatpush1.msra.mxu0 0.0
    %1040 = vmatprep.subr.mxu0 0.0
    %1041 = vmatpush1.msra.mxu0 0.0
    %1042 = vmatprep.mubr.f32.mxu0 0.0
    %1043 = vmatmul.mubr.f32.gmra.mrb[0].mxu0 %v976
    %v1044 = vpop.f32.mrb[0].mxu0
    %v1045 = vadd.f32 0.0, %v1044
    %v1046 = vpop.f32.mrb[0].mxu0
    %1047 = vdwg.mxu0
    %v1048 = vrcp.pop %v974
    %v1049 = vmul.f32 1.0, %v1048
    %v1050 = vmul.f32 %v1045, %v1049
    %1051 = vmatprep.subr.mxu0 0.0
    %1052 = vmatpush1.xpose.msra.mxu0 %v1050
    %1053 = vmatprep.subr.mxu0 0.0
    %1054 = vmatpush1.xpose.msra.mxu0 0.0
    %1055 = vmatprep.subr.mxu0 0.0
    %1056 = vmatpush1.xpose.msra.mxu0 0.0
    %1057 = vmatprep.subr.mxu0 0.0
    %1058 = vmatpush1.xpose.msra.mxu0 0.0
    %1059 = vmatprep.subr.mxu0 0.0
    %1060 = vmatpush1.xpose.msra.mxu0 0.0
    %1061 = vmatprep.subr.mxu0 0.0
    %1062 = vmatpush1.xpose.msra.mxu0 0.0
    %1063 = vmatprep.subr.mxu0 0.0
    %1064 = vmatpush1.xpose.msra.mxu0 0.0
    %1065 = vmatprep.subr.mxu0 0.0
    %1066 = vmatpush1.xpose.msra.mxu0 0.0
    %1067 = vmatprep.subr.mxu0 0.0
    %1068 = vmatpush1.xpose.msra.mxu0 0.0
    %1069 = vmatprep.subr.mxu0 0.0
    %1070 = vmatpush1.xpose.msra.mxu0 0.0
    %1071 = vmatprep.subr.mxu0 0.0
    %1072 = vmatpush1.xpose.msra.mxu0 0.0
    %1073 = vmatprep.subr.mxu0 0.0
    %1074 = vmatpush1.xpose.msra.mxu0 0.0
    %1075 = vmatprep.subr.mxu0 0.0
    %1076 = vmatpush1.xpose.msra.mxu0 0.0
    %1077 = vmatprep.subr.mxu0 0.0
    %1078 = vmatpush1.xpose.msra.mxu0 0.0
    %1079 = vmatprep.subr.mxu0 0.0
    %1080 = vmatpush1.xpose.msra.mxu0 0.0
    %1081 = vmatprep.subr.mxu0 0.0
    %1082 = vmatpush1.xpose.msra.mxu0 0.0
    %1083 = vmatprep.subr.mxu0 0.0
    %1084 = vmatpush1.xpose.msra.mxu0 0.0
    %1085 = vmatprep.subr.mxu0 0.0
    %1086 = vmatpush1.xpose.msra.mxu0 0.0
    %1087 = vmatprep.subr.mxu0 0.0
    %1088 = vmatpush1.xpose.msra.mxu0 0.0
    %1089 = vmatprep.subr.mxu0 0.0
    %1090 = vmatpush1.xpose.msra.mxu0 0.0
    %1091 = vmatprep.subr.mxu0 0.0
    %1092 = vmatpush1.xpose.msra.mxu0 0.0
    %1093 = vmatprep.subr.mxu0 0.0
    %1094 = vmatpush1.xpose.msra.mxu0 0.0
    %1095 = vmatprep.subr.mxu0 0.0
    %1096 = vmatpush1.xpose.msra.mxu0 0.0
    %1097 = vmatprep.subr.mxu0 0.0
    %1098 = vmatpush1.xpose.msra.mxu0 0.0
    %1099 = vmatprep.subr.mxu0 0.0
    %1100 = vmatpush1.xpose.msra.mxu0 0.0
    %1101 = vmatprep.subr.mxu0 0.0
    %1102 = vmatpush1.xpose.msra.mxu0 0.0
    %1103 = vmatprep.subr.mxu0 0.0
    %1104 = vmatpush1.xpose.msra.mxu0 0.0
    %1105 = vmatprep.subr.mxu0 0.0
    %1106 = vmatpush1.xpose.msra.mxu0 0.0
    %1107 = vmatprep.subr.mxu0 0.0
    %1108 = vmatpush1.xpose.msra.mxu0 0.0
    %1109 = vmatprep.subr.mxu0 0.0
    %1110 = vmatpush1.xpose.msra.mxu0 0.0
    %1111 = vmatprep.subr.mxu0 0.0
    %1112 = vmatpush1.xpose.msra.mxu0 0.0
    %1113 = vmatprep.subr.mxu0 0.0
    %1114 = vmatpush1.xpose.msra.mxu0 0.0
    %1115 = vmatprep.mubr.f32.mxu0 0.0
    %1116 = vmatmul.mubr.f32.gmra.mrb[0].mxu0 %v35
    %v1117 = vpop.f32.mrb[0].mxu0
    %v1118 = vadd.f32 0.0, %v1117
    %v1119 = vpop.f32.mrb[0].mxu0
    %1120 = vdwg.mxu0
    %1121 = vxpose.xlu0.b32.start [1/16] %v894, 128
    %1122 = vxpose.xlu0.b32.cont [2/16] 0.0, 128
    %1123 = vxpose.xlu0.b32.cont [3/16] 0.0, 128
    %1124 = vxpose.xlu0.b32.cont [4/16] 0.0, 128
    %1125 = vxpose.xlu0.b32.cont [5/16] 0.0, 128
    %1126 = vxpose.xlu0.b32.cont [6/16] 0.0, 128
    %1127 = vxpose.xlu0.b32.cont [7/16] 0.0, 128
    %1128 = vxpose.xlu0.b32.cont [8/16] 0.0, 128
    %1129 = vxpose.xlu0.b32.cont [9/16] 0.0, 128
    %1130 = vxpose.xlu0.b32.cont [10/16] 0.0, 128
    %1131 = vxpose.xlu0.b32.cont [11/16] 0.0, 128
    %1132 = vxpose.xlu0.b32.cont [12/16] 0.0, 128
    %1133 = vxpose.xlu0.b32.cont [13/16] 0.0, 128
    %1134 = vxpose.xlu0.b32.cont [14/16] 0.0, 128
    %1135 = vxpose.xlu0.b32.cont [15/16] 0.0, 128
    %1136 = vxpose.xlu0.b32.end [16/16] 0.0, 128
    %v1137 = vpop.trf.xlu0
    %v1138 = vpop.trf.xlu0
    %v1139 = vpop.trf.xlu0
    %v1140 = vpop.trf.xlu0
    %v1141 = vpop.trf.xlu0
    %v1142 = vpop.trf.xlu0
    %v1143 = vpop.trf.xlu0
    %v1144 = vpop.trf.xlu0
    %v1145 = vpop.trf.xlu0
    %v1146 = vpop.trf.xlu0
    %v1147 = vpop.trf.xlu0
    %v1148 = vpop.trf.xlu0
    %v1149 = vpop.trf.xlu0
    %v1150 = vpop.trf.xlu0
    %v1151 = vpop.trf.xlu0
    %v1152 = vpop.trf.xlu0
    %v1154 = vsel %vm643, %v1137, 0
    %1156 = vmatprep.subr.mxu0 0.0
    %1157 = vmatpush1.msra.mxu0 %v649
    %1158 = vmatprep.subr.mxu0 0.0
    %1159 = vmatpush1.msra.mxu0 0.0
    %1160 = vmatprep.subr.mxu0 0.0
    %1161 = vmatpush1.msra.mxu0 0.0
    %1162 = vmatprep.subr.mxu0 0.0
    %1163 = vmatpush1.msra.mxu0 0.0
    %1164 = vmatprep.subr.mxu0 0.0
    %1165 = vmatpush1.msra.mxu0 0.0
    %1166 = vmatprep.subr.mxu0 0.0
    %1167 = vmatpush1.msra.mxu0 0.0
    %1168 = vmatprep.subr.mxu0 0.0
    %1169 = vmatpush1.msra.mxu0 0.0
    %1170 = vmatprep.subr.mxu0 0.0
    %1171 = vmatpush1.msra.mxu0 0.0
    %1172 = vmatprep.subr.mxu0 0.0
    %1173 = vmatpush1.msra.mxu0 0.0
    %1174 = vmatprep.subr.mxu0 0.0
    %1175 = vmatpush1.msra.mxu0 0.0
    %1176 = vmatprep.subr.mxu0 0.0
    %1177 = vmatpush1.msra.mxu0 0.0
    %1178 = vmatprep.subr.mxu0 0.0
    %1179 = vmatpush1.msra.mxu0 0.0
    %1180 = vmatprep.subr.mxu0 0.0
    %1181 = vmatpush1.msra.mxu0 0.0
    %1182 = vmatprep.subr.mxu0 0.0
    %1183 = vmatpush1.msra.mxu0 0.0
    %1184 = vmatprep.subr.mxu0 0.0
    %1185 = vmatpush1.msra.mxu0 0.0
    %1186 = vmatprep.subr.mxu0 0.0
    %1187 = vmatpush1.msra.mxu0 0.0
    %1188 = vmatprep.subr.mxu0 0.0
    %1189 = vmatpush1.msra.mxu0 0.0
    %1190 = vmatprep.subr.mxu0 0.0
    %1191 = vmatpush1.msra.mxu0 0.0
    %1192 = vmatprep.subr.mxu0 0.0
    %1193 = vmatpush1.msra.mxu0 0.0
    %1194 = vmatprep.subr.mxu0 0.0
    %1195 = vmatpush1.msra.mxu0 0.0
    %1196 = vmatprep.subr.mxu0 0.0
    %1197 = vmatpush1.msra.mxu0 0.0
    %1198 = vmatprep.subr.mxu0 0.0
    %1199 = vmatpush1.msra.mxu0 0.0
    %1200 = vmatprep.subr.mxu0 0.0
    %1201 = vmatpush1.msra.mxu0 0.0
    %1202 = vmatprep.subr.mxu0 0.0
    %1203 = vmatpush1.msra.mxu0 0.0
    %1204 = vmatprep.subr.mxu0 0.0
    %1205 = vmatpush1.msra.mxu0 0.0
    %1206 = vmatprep.subr.mxu0 0.0
    %1207 = vmatpush1.msra.mxu0 0.0
    %1208 = vmatprep.subr.mxu0 0.0
    %1209 = vmatpush1.msra.mxu0 0.0
    %1210 = vmatprep.subr.mxu0 0.0
    %1211 = vmatpush1.msra.mxu0 0.0
    %1212 = vmatprep.subr.mxu0 0.0
    %1213 = vmatpush1.msra.mxu0 0.0
    %1214 = vmatprep.subr.mxu0 0.0
    %1215 = vmatpush1.msra.mxu0 0.0
    %1216 = vmatprep.subr.mxu0 0.0
    %1217 = vmatpush1.msra.mxu0 0.0
    %1218 = vmatprep.subr.mxu0 0.0
    %1219 = vmatpush1.msra.mxu0 0.0
    %1220 = vmatprep.mubr.f32.mxu0 0.0
    %1221 = vmatmul.mubr.f32.gmra.mrb[0].mxu0 %v1154
    %v1222 = vpop.f32.mrb[0].mxu0
    %v1223 = vadd.f32 0.0, %v1222
    %v1224 = vpop.f32.mrb[0].mxu0
    %1225 = vdwg.mxu0
    %v1226 = vxor.u32 %v1118, 2147483648
    %v1227 = vmul.f32 %v1226, 1.442695
    %v1228 = vpow.pop %v1227
    %v1229 = vadd.f32 %v1228, 1.0
    %v1230 = vrcp.pop %v1229
    %v1231 = vmul.f32 1.0, %v1230
    %v1232 = vmul.f32 %v1231, %v894
    %v1233 = vxor.u32 %v1223, 2147483648
    %v1234 = vmul.f32 %v1233, 1.442695
    %v1235 = vpow.pop %v1234
    %v1236 = vadd.f32 %v1235, 1.0
    %v1237 = vrcp.pop %v1236
    %v1238 = vmul.f32 1.0, %v1237
    %v1239 = vmul.f32 %v1238, %v1050
    %v1241 = vrot.slane %v820, 1
    %v1243 = vmul.f32 %v1232, %v1241
    %v1244 = vrot.slane %v820, 7
    %v1246 = vmul.f32 %v1232, %v1244
    %v1248 = vrot.slane %v1246, 1
    %v1250 = vsub.f32 %v1243, %v1248
    %v1251 = vrot.slane %v820, 6
    %v1253 = vmul.f32 %v1232, %v1251
    %v1254 = vrot.slane %v820, 2
    %v1256 = vmul.f32 %v1232, %v1254
    %v1258 = vrot.slane %v1256, 6
    %v1260 = vsub.f32 %v1253, %v1258
    %v1262 = vrot.slane %v1250, 1
    %v1265 = vrot.slane %v1260, 1
    %v1267 = vrot.slane %v1250, 6
    %v1269 = vsel %vm764, %v1262, %v1265
    %v1270 = vsel %vm766, %v1269, %v1267
    %v1271 = vadd.f32 %v791, %v1270
    %v1272 = vxor.u32 %v1271, 2147483648
    %v1273 = vmul.f32 %v1272, 1.442695
    %v1274 = vpow.pop %v1273
    %v1275 = vadd.f32 %v1274, 1.0
    %v1276 = vrcp.pop %v1275
    %v1277 = vmul.f32 1.0, %v1276
    %v1278 = vmul.f32 %v1271, %v1277
    %s1279 = scalar_lea.vmem %s7, 4
    %1280 = vst.msk [vmem:[%s1279] sm:$0x7] %vm776, %v1278
    %v1281 = vmul.f32 %v1239, %v236
    %1282 = vadd.xlane.f32.xlu0 %v1281
    %v1283 = vpop.xlane.xlu0 %1282
    %v1284 = vadd.f32 %v793, %v1283
    %v1285 = vxor.u32 %v1284, 2147483648
    %v1286 = vmul.f32 %v1285, 1.442695
    %v1287 = vpow.pop %v1286
    %v1288 = vadd.f32 %v1287, 1.0
    %v1289 = vrcp.pop %v1288
    %v1290 = vmul.f32 1.0, %v1289
    %v1291 = vmul.f32 %v1284, %v1290
    %s1292 = scalar_lea.vmem [#allocation2], 8
    %1293 = vst [vmem:[%s1292] sm:$0xff] %v1291
    // Predicated region
    $region30: #{clifford_se3_hyena.1} parent=1 // pred_check
      _
    $region31: #{clifford_se3_hyena.1} parent=1 // pred_check_branch
      %1295 = sbr.rel (0) target = $region33
    $region32: #{clifford_se3_hyena.1} parent=1 // pred_region
      _
    $region33: #{clifford_se3_hyena.1} parent=1 // pred_fallthru
      _
    // Predicated region
    $region34: #{clifford_se3_hyena.1} parent=1 // pred_check
      _
    $region35: #{clifford_se3_hyena.1} parent=1 // pred_check_branch
      %1297 = sbr.rel (0) target = $region37
    $region36: #{clifford_se3_hyena.1} parent=1 // pred_region
      %s1299 = ssub.s32 256, 256
      %1300 = vsyncadd [#allocation3], %s1299
      %s1301 = sshll.u32 [#allocation2], 4
      %s1302 = int_to_ptr.vmem [resolvable:$true] %s1301
      %1307 = dma.vmem_to_hbm [thread:$0]  %s1302, 256, %s8, [#allocation3], 128, 128, 8
    $region37: #{clifford_se3_hyena.1} parent=1 // pred_fallthru
      _
    // Predicated region
    $region38: #{clifford_se3_hyena.1} parent=1 // pred_check
      _
    $region39: #{clifford_se3_hyena.1} parent=1 // pred_check_branch
      %1309 = sbr.rel (0) target = $region41
    $region40: #{clifford_se3_hyena.1} parent=1 // pred_region
      _
    $region41: #{clifford_se3_hyena.1} parent=1 // pred_fallthru
      _
    // Predicated region
    $region42: #{clifford_se3_hyena.1} parent=1 // pred_check
      _
    $region43: #{clifford_se3_hyena.1} parent=1 // pred_check_branch
      %1311 = sbr.rel (0) target = $region45
    $region44: #{clifford_se3_hyena.1} parent=1 // pred_region
      %1312 = dma.done [#allocation3], 256
    $region45: #{clifford_se3_hyena.1} parent=1 // pred_fallthru
      _
    %1313 = vsyncpa [#allocation3], 1

</llo_original>
